<compile_context>
chip_gen: v7x
topology: tpu7x:2x2x1
jax: 0.10.0
libtpu: 0.0.40
codegen_flags: <defaults>
</compile_context>

<pallas_src>
import functools
import math

import jax
import jax.numpy as jnp
from jax import lax
from jax.experimental import pallas as pl
from jax.experimental.pallas import tpu as pltpu


_CHUNK_LANES = 1024      # register-accumulation chunk width (lanes)
_MAX_TILE_LANES = 16384  # cap on lanes per grid tile (bounds unrolled chunks)


def _round_up(n, m):
    return ((n + m - 1) // m) * m


# ----------------------------------------------------------------------------
# Pallas kernel
# ----------------------------------------------------------------------------
def _evest_kernel(center_ref, *rest, W, chunk_lanes, has_halo):
    """One (batch, row-tile) grid step.

    center_ref : (1, Cin, Lc)        this tile, channels-major, flat spatial
    [top_ref]  : (1, Cin, 8, W)      8-row block holding the row above (halo path)
    [bot_ref]  : (1, Cin, 8, W)      8-row block holding the row below (halo path)
    w3_ref     : (9, Cb, Cin)        3x3 taps with BN scale pre-folded
    shift_ref  : (Cb, 1)             folded BN shift (f32)
    wh_ref     : (4, Cb)             fused shadow(0:2)/stroke(2:4) 1x1 weights
    bh_ref     : (4, 1)              fused head bias (f32)
    out_ref    : (1, 4, Lc)          fused output slab
    ws_ref     : VMEM (Cin, Lc+2W+2) halo-extended window scratch
    """
    if has_halo:
        top_ref, bot_ref, w3_ref, shift_ref, wh_ref, bh_ref, out_ref, ws_ref = rest
    else:
        w3_ref, shift_ref, wh_ref, bh_ref, out_ref, ws_ref = rest

    Cin = center_ref.shape[1]
    Lc = center_ref.shape[2]
    cdt = ws_ref.dtype

    # ---- assemble [guard | row -1 | tile | row +1 | guard] in VMEM ----------
    zcol = jnp.zeros((Cin, 1), cdt)
    ws_ref[:, 0:1] = zcol                              # left guard column
    ws_ref[:, 1 + 2 * W + Lc:] = zcol                  # right guard column
    if has_halo:
        t = pl.program_id(1)
        n_t = pl.num_programs(1)
        hb = top_ref.shape[2]
        top_row = top_ref[0][:, hb - 1, :].astype(cdt)     # image row above tile
        bot_row = bot_ref[0][:, 0, :].astype(cdt)          # image row below tile
        # zero the halo rows at the image boundary (padding=1 semantics)
        ws_ref[:, 1:1 + W] = top_row * (t > 0).astype(cdt)
        ws_ref[:, 1 + W + Lc:1 + W + Lc + W] = bot_row * (t < n_t - 1).astype(cdt)
    else:
        zrow = jnp.zeros((Cin, W), cdt)
        ws_ref[:, 1:1 + W] = zrow
        ws_ref[:, 1 + W + Lc:1 + W + Lc + W] = zrow
    ws_ref[:, 1 + W:1 + W + Lc] = center_ref[0].astype(cdt)

    # ---- hoisted operand loads ----------------------------------------------
    w3_all = w3_ref[...]          # (9, Cb, Cin)
    shift = shift_ref[...]        # (Cb, 1) f32
    wh = wh_ref[...]              # (4, Cb)
    bh = bh_ref[...]              # (4, 1) f32

    # ---- chunked 3x3 conv (register acc) + BN shift + ReLU + fused heads ----
    for s in range(0, Lc, chunk_lanes):
        lk = min(chunk_lanes, Lc - s)
        base = 1 + W + s

        # column-validity masks (horizontal zero padding across row seams)
        col = (lax.broadcasted_iota(jnp.int32, (1, lk), 1) + s) % W
        left_ok = col >= 1           # a left neighbour exists (kx = -1)
        right_ok = col <= W - 2      # a right neighbour exists (kx = +1)

        acc = None
        for ky in (-1, 0, 1):
            for kx in (-1, 0, 1):
                st = base + ky * W + kx                      # static lane offset
                win = ws_ref[:, st:st + lk]                  # (Cin, lk)
                if kx == -1:
                    win = jnp.where(left_ok, win, jnp.zeros_like(win))
                elif kx == 1:
                    win = jnp.where(right_ok, win, jnp.zeros_like(win))
                tap = w3_all[(ky + 1) * 3 + (kx + 1)]        # (Cb, Cin)
                contrib = jnp.dot(tap, win, preferred_element_type=jnp.float32)
                acc = contrib if acc is None else acc + contrib

        feat = jnp.maximum(acc + shift, 0.0)                 # (Cb, lk) f32
        out = jnp.dot(wh, feat.astype(wh.dtype),
                      preferred_element_type=jnp.float32) + bh
        out_ref[0, :, s:s + lk] = out.astype(out_ref.dtype)


# ----------------------------------------------------------------------------
# Tile-size selection (honest padded VMEM footprint, lane-dense blocks)
# ----------------------------------------------------------------------------
def _tile_candidates(H, W):
    cands = {H}
    if H % 8 == 0:
        for th in range(8, H, 8):
            if H % th == 0 and (th * W) % 128 == 0:
                cands.add(th)
    return sorted(cands)


def _choose_tile_h(H, W, Cin, in_bytes, out_bytes, ws_bytes, vmem_budget,
                   prefer_split):
    def footprint(th):
        Lc = th * W
        n_t = H // th
        f = 2 * _round_up(Cin, 8) * _round_up(Lc, 128) * in_bytes       # center, dbl-buf
        f += 2 * 8 * _round_up(Lc, 128) * out_bytes                     # output (4->8 sublanes), dbl-buf
        f += _round_up(Cin, 8) * _round_up(Lc + 2 * W + 2, 128) * ws_bytes  # window scratch
        if n_t > 1:
            f += 4 * _round_up(Cin, 8) * 8 * _round_up(W, 128) * in_bytes   # 2 halo blocks, dbl-buf
        return f

    cands = _tile_candidates(H, W)
    ok = [th for th in cands
          if th * W <= _MAX_TILE_LANES and footprint(th) <= vmem_budget]
    if not ok:
        return min(cands, key=lambda th: (th * W, footprint(th)))
    best = max(ok)
    if prefer_split and H // best == 1:
        split = [th for th in ok if H // th >= 2]
        if split:
            best = max(split)       # keep both TensorCores busy on v7x
    return best


# ----------------------------------------------------------------------------
# Wrapper
# ----------------------------------------------------------------------------
def effect_visibility_estimator(x_nchw, params, *, compute_dtype=None,
                                out_dtype=None, tile_h=None):
    """Forward pass. x_nchw: (B, Cin, H, W). Returns (shadow, stroke), each
    (B, 2, H, W) in NCHW, matching the PyTorch module."""
    w3 = params["w3"]              # (3, 3, Cin, Cb)  HWIO
    B, Cin, H, W = x_nchw.shape
    Cb = w3.shape[3]
    HW = H * W

    cd = jnp.dtype(x_nchw.dtype if compute_dtype is None else compute_dtype)
    od = jnp.dtype(x_nchw.dtype if out_dtype is None else out_dtype)
    in_bytes = jnp.dtype(x_nchw.dtype).itemsize
    cd_bytes = cd.itemsize
    od_bytes = od.itemsize

    # ---- per-generation VMEM limits (v7x: 64 MiB physical; v5e/v6e: 128 MiB)
    try:
        vmem_cap = pltpu.get_tpu_info().vmem_capacity_bytes
    except Exception:
        vmem_cap = 64 * 1024 * 1024
    vmem_limit = min(vmem_cap * 3 // 4, 112 * 1024 * 1024)
    budget = int(vmem_limit * 0.7)    # ~30% headroom under the scoped limit

    try:
        num_cores = int(getattr(jax.devices()[0], "num_cores", 1) or 1)
    except Exception:
        num_cores = 1

    if tile_h is None:
        tile_h = _choose_tile_h(H, W, Cin, in_bytes, od_bytes, cd_bytes, budget,
                                prefer_split=(B == 1 and num_cores >= 2))
    assert H % tile_h == 0, "tile_h must divide H"
    assert tile_h == H or (tile_h % 8 == 0 and (tile_h * W) % 128 == 0), \
        "partial tiles need tile_h % 8 == 0 and (tile_h*W) % 128 == 0"
    n_tiles = H // tile_h
    Lc = tile_h * W
    Lws = Lc + 2 * W + 2
    has_halo = n_tiles > 1
    chunk = min(Lc, _CHUNK_LANES)

    # NCHW -> channels-major / spatial-in-lanes view.  NOTE: for W % 128 != 0
    # XLA may insert a relayout copy here; feeding/consuming the flat (C, HW)
    # layout end-to-end upstream/downstream avoids it.
    x_flat = x_nchw.reshape(B, Cin, HW)

    # Fold BN scale into the conv taps (host side); keep only the shift.
    bn_scale = params["bn_scale"].astype(jnp.float32)
    bn_shift = params["bn_shift"].astype(jnp.float32)
    w3_k = jnp.transpose(w3, (0, 1, 3, 2)).reshape(9, Cb, Cin).astype(jnp.float32)
    w3_k = (w3_k * bn_scale.reshape(1, Cb, 1)).astype(cd)
    shift2d = bn_shift.reshape(Cb, 1)
    # fused heads: rows 0-1 -> shadow, rows 2-3 -> stroke
    w_heads = jnp.concatenate([params["w_shadow"].T, params["w_stroke"].T],
                              axis=0).astype(cd)                          # (4, Cb)
    b_heads = jnp.concatenate([params["b_shadow"], params["b_stroke"]],
                              axis=0).reshape(4, 1).astype(jnp.float32)   # (4, 1)

    kernel = functools.partial(_evest_kernel, W=W, chunk_lanes=chunk,
                               has_halo=has_halo)

    in_specs = [pl.BlockSpec((1, Cin, Lc), lambda b, t: (b, 0, t))]
    args = [x_flat]
    if has_halo:
        th8 = tile_h // 8
        nHb = H // 8
        in_specs += [
            pl.BlockSpec((1, Cin, 8, W),
                         lambda b, t: (b, 0, jnp.maximum(t * th8 - 1, 0), 0)),
            pl.BlockSpec((1, Cin, 8, W),
                         lambda b, t: (b, 0, jnp.minimum((t + 1) * th8, nHb - 1), 0)),
        ]
        args += [x_nchw, x_nchw]
    in_specs += [
        pl.BlockSpec((9, Cb, Cin), lambda b, t: (0, 0, 0)),
        pl.BlockSpec((Cb, 1), lambda b, t: (0, 0)),
        pl.BlockSpec((4, Cb), lambda b, t: (0, 0)),
        pl.BlockSpec((4, 1), lambda b, t: (0, 0)),
    ]
    args += [w3_k, shift2d, w_heads, b_heads]

    flops = 2 * B * HW * (9 * Cin * Cb + Cb * 4)
    bytes_accessed = (B * Cin * HW * in_bytes
                      + (B * n_tiles * 2 * Cin * 8 * W * in_bytes if has_halo else 0)
                      + B * 4 * HW * od_bytes
                      + (9 * Cb * Cin + 4 * Cb) * cd_bytes + (Cb + 4) * 4)

    fused = pl.pallas_call(
        kernel,
        out_shape=jax.ShapeDtypeStruct((B, 4, HW), od),
        grid=(B, n_tiles),
        in_specs=in_specs,
        out_specs=pl.BlockSpec((1, 4, Lc), lambda b, t: (b, 0, t)),
        scratch_shapes=[pltpu.VMEM((Cin, Lws), cd)],
        compiler_params=pltpu.CompilerParams(
            dimension_semantics=("parallel", "parallel"),
            vmem_limit_bytes=int(vmem_limit)),
        cost_estimate=pl.CostEstimate(flops=flops, transcendentals=0,
                                      bytes_accessed=int(bytes_accessed)),
    )(*args)

    fused = fused.reshape(B, 4, H, W)
    return fused[:, 0:2], fused[:, 2:4]   # (shadow, stroke)


# ----------------------------------------------------------------------------
# Deterministic parameter initialization (mirrors module's initialize_weights)
# ----------------------------------------------------------------------------
def init_params(key, in_channels, bottleneck_channels):
    k1, k2, k3 = jax.random.split(key, 3)

    def xavier_normal(k, shape_hwio):
        kh, kw, cin, cout = shape_hwio
        fan_in = cin * kh * kw
        fan_out = cout * kh * kw
        std = math.sqrt(2.0 / (fan_in + fan_out))
        return std * jax.random.normal(k, shape_hwio, dtype=jnp.float32)

    # conv3x3 (no bias in conv3x3_bn_relu).
    w3 = xavier_normal(k1, (3, 3, in_channels, bottleneck_channels))

    # BatchNorm (eval mode): gamma=1, beta=0, running_mean=0, running_var=1.
    eps = 1e-5
    gamma = jnp.ones((bottleneck_channels,), jnp.float32)
    beta = jnp.zeros((bottleneck_channels,), jnp.float32)
    running_mean = jnp.zeros((bottleneck_channels,), jnp.float32)
    running_var = jnp.ones((bottleneck_channels,), jnp.float32)
    bn_scale = gamma / jnp.sqrt(running_var + eps)
    bn_shift = beta - running_mean * bn_scale

    # 1x1 convs with zero-initialized bias.
    w_sh = xavier_normal(k2, (1, 1, bottleneck_channels, 2)).reshape(
        bottleneck_channels, 2)
    w_st = xavier_normal(k3, (1, 1, bottleneck_channels, 2)).reshape(
        bottleneck_channels, 2)

    return {
        "w3": w3,
        "bn_scale": bn_scale,
        "bn_shift": bn_shift,
        "w_shadow": w_sh,
        "b_shadow": jnp.zeros((2,), jnp.float32),
        "w_stroke": w_st,
        "b_stroke": jnp.zeros((2,), jnp.float32),
    }


# ----------------------------------------------------------------------------
# Pure-JAX reference (sanity check)
# ----------------------------------------------------------------------------
def reference_forward(x_nchw, params):
    x = x_nchw.astype(jnp.float32)
    feat = lax.conv_general_dilated(
        x, jnp.transpose(params["w3"], (3, 2, 0, 1)),  # HWIO -> OIHW
        window_strides=(1, 1), padding=((1, 1), (1, 1)),
        dimension_numbers=("NCHW", "OIHW", "NCHW"))
    feat = feat * params["bn_scale"][None, :, None, None] \
        + params["bn_shift"][None, :, None, None]
    feat = jnp.maximum(feat, 0.0)

    def conv1x1(f, w, b):
        w_oihw = jnp.transpose(w, (1, 0))[:, :, None, None]
        out = lax.conv_general_dilated(
            f, w_oihw, (1, 1), "VALID",
            dimension_numbers=("NCHW", "OIHW", "NCHW"))
        return out + b[None, :, None, None]

    shadow = conv1x1(feat, params["w_shadow"], params["b_shadow"])
    stroke = conv1x1(feat, params["w_stroke"], params["b_stroke"])
    return shadow, stroke


if __name__ == "__main__":
    key = jax.random.PRNGKey(0)
    k_x, k_p = jax.random.split(key)

    B, Cin, H, W = 2, 4, 16, 16
    bottleneck = 8

    x = jax.random.normal(k_x, (B, Cin, H, W), dtype=jnp.float32)
    params = init_params(k_p, Cin, bottleneck)

    shadow_ref, stroke_ref = reference_forward(x, params)

    # 1) default (auto tile size -> single tile, no halos), f32 compute
    shadow, stroke = effect_visibility_estimator(x, params)
    jax.block_until_ready((shadow, stroke))
    assert shadow.shape == (B, 2, H, W) and stroke.shape == (B, 2, H, W)
    assert jnp.allclose(shadow, shadow_ref, atol=1e-3, rtol=1e-3)
    assert jnp.allclose(stroke, stroke_ref, atol=1e-3, rtol=1e-3)

    # 2) explicit 2-way spatial tiling (exercises the halo-row path), f32
    shadow2, stroke2 = effect_visibility_estimator(x, params, tile_h=8)
    jax.block_until_ready((shadow2, stroke2))
    assert jnp.allclose(shadow2, shadow_ref, atol=1e-3, rtol=1e-3)
    assert jnp.allclose(stroke2, stroke_ref, atol=1e-3, rtol=1e-3)

    # 3) bf16 matmul operands (cast happens IN-KERNEL, no extra HBM pre-pass);
    #    note: this re-quantizes the post-BN/ReLU activations before the 1x1
    #    heads, hence the loose tolerance vs the f32 reference.
    shadow3, stroke3 = effect_visibility_estimator(
        x, params, tile_h=8, compute_dtype=jnp.bfloat16)
    jax.block_until_ready((shadow3, stroke3))
    assert float(jnp.max(jnp.abs(shadow3 - shadow_ref))) < 0.2
    assert float(jnp.max(jnp.abs(stroke3 - stroke_ref))) < 0.2

    print("KERNEL_OK")
</pallas_src>

<mosaic_0001>
module attributes {stable_mosaic.version = 11 : i64} {
  func.func @_evest_kernel(%arg0: i32, %arg1: i32, %arg2: memref<1x4x256xf32, #tpu.memory_space<vmem>>, %arg3: memref<9x8x4xf32, #tpu.memory_space<vmem>>, %arg4: memref<8x1xf32, #tpu.memory_space<vmem>>, %arg5: memref<4x8xf32, #tpu.memory_space<vmem>>, %arg6: memref<4x1xf32, #tpu.memory_space<vmem>>, %arg7: memref<1x4x256xf32, #tpu.memory_space<vmem>>, %arg8: memref<4x290xf32, #tpu.memory_space<vmem>>) attributes {dimension_semantics = [#tpu.dimension_semantics<parallel>, #tpu.dimension_semantics<parallel>], iteration_bounds = array<i64: 2, 1>, scalar_prefetch = 0 : i64, scratch_operands = 1 : i64, tpu.core_type = #tpu.core_type<tc>, window_params = [{transform_indices = @transform_0, window_bounds = array<i64: 1, 4, 256>}, {pipeline_mode = #tpu.pipeline_mode<synchronous>, transform_indices = @transform_1, window_bounds = array<i64: 9, 8, 4>}, {pipeline_mode = #tpu.pipeline_mode<synchronous>, transform_indices = @transform_2, window_bounds = array<i64: 8, 1>}, {pipeline_mode = #tpu.pipeline_mode<synchronous>, transform_indices = @transform_3, window_bounds = array<i64: 4, 8>}, {pipeline_mode = #tpu.pipeline_mode<synchronous>, transform_indices = @transform_4, window_bounds = array<i64: 4, 1>}, {transform_indices = @transform_5, window_bounds = array<i64: 1, 4, 256>}]} {
    %cst = arith.constant 0.000000e+00 : f32
    %0 = vector.broadcast %cst : f32 to vector<4x1xf32>
    %c0 = arith.constant 0 : index
    %c0_0 = arith.constant 0 : index
    %1 = vector.load %arg8[%c0, %c0_0] : memref<4x290xf32, #tpu.memory_space<vmem>>, vector<4x1xf32>
    tpu.vector_store %arg8[%c0, %c0_0], %0 {strides = array<i32>} : memref<4x290xf32, #tpu.memory_space<vmem>>, vector<4x1xf32>,
    %c0_1 = arith.constant 0 : index
    %c289 = arith.constant 289 : index
    %2 = vector.load %arg8[%c0_1, %c289] : memref<4x290xf32, #tpu.memory_space<vmem>>, vector<4x1xf32>
    tpu.vector_store %arg8[%c0_1, %c289], %0 {strides = array<i32>} : memref<4x290xf32, #tpu.memory_space<vmem>>, vector<4x1xf32>,
    %cst_2 = arith.constant 0.000000e+00 : f32
    %3 = vector.broadcast %cst_2 : f32 to vector<4x16xf32>
    %c0_3 = arith.constant 0 : index
    %c1 = arith.constant 1 : index
    %4 = vector.load %arg8[%c0_3, %c1] : memref<4x290xf32, #tpu.memory_space<vmem>>, vector<4x16xf32>
    tpu.vector_store %arg8[%c0_3, %c1], %3 {strides = array<i32>} : memref<4x290xf32, #tpu.memory_space<vmem>>, vector<4x16xf32>,
    %c0_4 = arith.constant 0 : index
    %c273 = arith.constant 273 : index
    %5 = vector.load %arg8[%c0_4, %c273] : memref<4x290xf32, #tpu.memory_space<vmem>>, vector<4x16xf32>
    tpu.vector_store %arg8[%c0_4, %c273], %3 {strides = array<i32>} : memref<4x290xf32, #tpu.memory_space<vmem>>, vector<4x16xf32>,
    %c0_5 = arith.constant 0 : index
    %c0_6 = arith.constant 0 : index
    %c0_7 = arith.constant 0 : index
    %6 = vector.load %arg2[%c0_5, %c0_6, %c0_7] : memref<1x4x256xf32, #tpu.memory_space<vmem>>, vector<1x4x256xf32>
    %7 = vector.shape_cast %6 : vector<1x4x256xf32> to vector<4x256xf32>
    %c0_8 = arith.constant 0 : index
    %c17 = arith.constant 17 : index
    %8 = vector.load %arg8[%c0_8, %c17] : memref<4x290xf32, #tpu.memory_space<vmem>>, vector<4x256xf32>
    tpu.vector_store %arg8[%c0_8, %c17], %7 {strides = array<i32>} : memref<4x290xf32, #tpu.memory_space<vmem>>, vector<4x256xf32>,
    %c0_9 = arith.constant 0 : index
    %c0_10 = arith.constant 0 : index
    %c0_11 = arith.constant 0 : index
    %9 = vector.load %arg3[%c0_9, %c0_10, %c0_11] : memref<9x8x4xf32, #tpu.memory_space<vmem>>, vector<9x8x4xf32>
    %c0_12 = arith.constant 0 : index
    %c0_13 = arith.constant 0 : index
    %10 = vector.load %arg4[%c0_12, %c0_13] : memref<8x1xf32, #tpu.memory_space<vmem>>, vector<8x1xf32>
    %c0_14 = arith.constant 0 : index
    %c0_15 = arith.constant 0 : index
    %11 = vector.load %arg5[%c0_14, %c0_15] : memref<4x8xf32, #tpu.memory_space<vmem>>, vector<4x8xf32>
    %c0_16 = arith.constant 0 : index
    %c0_17 = arith.constant 0 : index
    %12 = vector.load %arg6[%c0_16, %c0_17] : memref<4x1xf32, #tpu.memory_space<vmem>>, vector<4x1xf32>
    %13 = tpu.iota {dimensions = array<i32: 1>} : vector<1x256xi32>
    %c0_i32 = arith.constant 0 : i32
    %14 = vector.broadcast %c0_i32 : i32 to vector<1x256xi32>
    %15 = arith.addi %13, %14 : vector<1x256xi32>
    %c16_i32 = arith.constant 16 : i32
    %c0_i32_18 = arith.constant 0 : i32
    %16 = arith.cmpi eq, %c16_i32, %c0_i32_18 : i32
    %c1_i32 = arith.constant 1 : i32
    %17 = arith.select %16, %c1_i32, %c16_i32 : i32
    %18 = vector.broadcast %17 : i32 to vector<1x256xi32>
    %19 = arith.remsi %15, %18 : vector<1x256xi32>
    %c0_i32_19 = arith.constant 0 : i32
    %20 = vector.broadcast %c0_i32_19 : i32 to vector<1x256xi32>
    %21 = arith.cmpi ne, %19, %20 : vector<1x256xi32>
    %c0_i32_20 = arith.constant 0 : i32
    %22 = vector.broadcast %c0_i32_20 : i32 to vector<1x256xi32>
    %23 = arith.cmpi slt, %19, %22 : vector<1x256xi32>
    %c0_i32_21 = arith.constant 0 : i32
    %24 = arith.cmpi slt, %17, %c0_i32_21 : i32
    %25 = vector.broadcast %24 : i1 to vector<1x256xi1>
    %26 = vector.broadcast %25 : vector<1x256xi1> to vector<1x256xi1>
    %27 = arith.xori %23, %26 : vector<1x256xi1>
    %28 = arith.andi %27, %21 : vector<1x256xi1>
    %29 = vector.broadcast %17 : i32 to vector<1x256xi32>
    %30 = arith.addi %19, %29 : vector<1x256xi32>
    %31 = arith.select %28, %30, %19 : vector<1x256xi1>, vector<1x256xi32>
    %c1_i32_22 = arith.constant 1 : i32
    %32 = vector.broadcast %c1_i32_22 : i32 to vector<1x256xi32>
    %33 = arith.cmpi sge, %31, %32 : vector<1x256xi32>
    %c14_i32 = arith.constant 14 : i32
    %34 = vector.broadcast %c14_i32 : i32 to vector<1x256xi32>
    %35 = arith.cmpi sle, %31, %34 : vector<1x256xi32>
    %c0_23 = arith.constant 0 : index
    %c0_24 = arith.constant 0 : index
    %36 = vector.load %arg8[%c0_23, %c0_24] : memref<4x290xf32, #tpu.memory_space<vmem>>, vector<4x256xf32>
    %cst_25 = arith.constant 0.000000e+00 : f32
    %37 = vector.broadcast %cst_25 : f32 to vector<4x256xf32>
    %38 = vector.shape_cast %33 : vector<1x256xi1> to vector<1x256xi1>
    %39 = vector.broadcast %38 : vector<1x256xi1> to vector<4x256xi1>
    %40 = arith.select %39, %36, %37 : vector<4x256xi1>, vector<4x256xf32>
    %41 = vector.extract_strided_slice %9 {offsets = [0, 0, 0], sizes = [1, 8, 4], strides = [1, 1, 1]} : vector<9x8x4xf32> to vector<1x8x4xf32>
    %42 = vector.shape_cast %41 : vector<1x8x4xf32> to vector<8x4xf32>
    %cst_26 = arith.constant dense<0.000000e+00> : vector<8x256xf32>
    %43 = tpu.matmul %42, %40, %cst_26 {dimension_numbers = #tpu.dot_dimension_numbers<[1], [0], [0], [1], [0, 0, 1, 1], [], []>} : vector<8x4xf32>, vector<4x256xf32>, vector<8x256xf32> -> vector<8x256xf32>
    %c0_27 = arith.constant 0 : index
    %c1_28 = arith.constant 1 : index
    %44 = vector.load %arg8[%c0_27, %c1_28] : memref<4x290xf32, #tpu.memory_space<vmem>>, vector<4x256xf32>
    %45 = vector.extract_strided_slice %9 {offsets = [1, 0, 0], sizes = [1, 8, 4], strides = [1, 1, 1]} : vector<9x8x4xf32> to vector<1x8x4xf32>
    %46 = vector.shape_cast %45 : vector<1x8x4xf32> to vector<8x4xf32>
    %cst_29 = arith.constant dense<0.000000e+00> : vector<8x256xf32>
    %47 = tpu.matmul %46, %44, %cst_29 {dimension_numbers = #tpu.dot_dimension_numbers<[1], [0], [0], [1], [0, 0, 1, 1], [], []>} : vector<8x4xf32>, vector<4x256xf32>, vector<8x256xf32> -> vector<8x256xf32>
    %48 = arith.addf %43, %47 : vector<8x256xf32>
    %c0_30 = arith.constant 0 : index
    %c2 = arith.constant 2 : index
    %49 = vector.load %arg8[%c0_30, %c2] : memref<4x290xf32, #tpu.memory_space<vmem>>, vector<4x256xf32>
    %cst_31 = arith.constant 0.000000e+00 : f32
    %50 = vector.broadcast %cst_31 : f32 to vector<4x256xf32>
    %51 = vector.shape_cast %35 : vector<1x256xi1> to vector<1x256xi1>
    %52 = vector.broadcast %51 : vector<1x256xi1> to vector<4x256xi1>
    %53 = arith.select %52, %49, %50 : vector<4x256xi1>, vector<4x256xf32>
    %54 = vector.extract_strided_slice %9 {offsets = [2, 0, 0], sizes = [1, 8, 4], strides = [1, 1, 1]} : vector<9x8x4xf32> to vector<1x8x4xf32>
    %55 = vector.shape_cast %54 : vector<1x8x4xf32> to vector<8x4xf32>
    %cst_32 = arith.constant dense<0.000000e+00> : vector<8x256xf32>
    %56 = tpu.matmul %55, %53, %cst_32 {dimension_numbers = #tpu.dot_dimension_numbers<[1], [0], [0], [1], [0, 0, 1, 1], [], []>} : vector<8x4xf32>, vector<4x256xf32>, vector<8x256xf32> -> vector<8x256xf32>
    %57 = arith.addf %48, %56 : vector<8x256xf32>
    %c0_33 = arith.constant 0 : index
    %c16 = arith.constant 16 : index
    %58 = vector.load %arg8[%c0_33, %c16] : memref<4x290xf32, #tpu.memory_space<vmem>>, vector<4x256xf32>
    %cst_34 = arith.constant 0.000000e+00 : f32
    %59 = vector.broadcast %cst_34 : f32 to vector<4x256xf32>
    %60 = vector.shape_cast %33 : vector<1x256xi1> to vector<1x256xi1>
    %61 = vector.broadcast %60 : vector<1x256xi1> to vector<4x256xi1>
    %62 = arith.select %61, %58, %59 : vector<4x256xi1>, vector<4x256xf32>
    %63 = vector.extract_strided_slice %9 {offsets = [3, 0, 0], sizes = [1, 8, 4], strides = [1, 1, 1]} : vector<9x8x4xf32> to vector<1x8x4xf32>
    %64 = vector.shape_cast %63 : vector<1x8x4xf32> to vector<8x4xf32>
    %cst_35 = arith.constant dense<0.000000e+00> : vector<8x256xf32>
    %65 = tpu.matmul %64, %62, %cst_35 {dimension_numbers = #tpu.dot_dimension_numbers<[1], [0], [0], [1], [0, 0, 1, 1], [], []>} : vector<8x4xf32>, vector<4x256xf32>, vector<8x256xf32> -> vector<8x256xf32>
    %66 = arith.addf %57, %65 : vector<8x256xf32>
    %c0_36 = arith.constant 0 : index
    %c17_37 = arith.constant 17 : index
    %67 = vector.load %arg8[%c0_36, %c17_37] : memref<4x290xf32, #tpu.memory_space<vmem>>, vector<4x256xf32>
    %68 = vector.extract_strided_slice %9 {offsets = [4, 0, 0], sizes = [1, 8, 4], strides = [1, 1, 1]} : vector<9x8x4xf32> to vector<1x8x4xf32>
    %69 = vector.shape_cast %68 : vector<1x8x4xf32> to vector<8x4xf32>
    %cst_38 = arith.constant dense<0.000000e+00> : vector<8x256xf32>
    %70 = tpu.matmul %69, %67, %cst_38 {dimension_numbers = #tpu.dot_dimension_numbers<[1], [0], [0], [1], [0, 0, 1, 1], [], []>} : vector<8x4xf32>, vector<4x256xf32>, vector<8x256xf32> -> vector<8x256xf32>
    %71 = arith.addf %66, %70 : vector<8x256xf32>
    %c0_39 = arith.constant 0 : index
    %c18 = arith.constant 18 : index
    %72 = vector.load %arg8[%c0_39, %c18] : memref<4x290xf32, #tpu.memory_space<vmem>>, vector<4x256xf32>
    %cst_40 = arith.constant 0.000000e+00 : f32
    %73 = vector.broadcast %cst_40 : f32 to vector<4x256xf32>
    %74 = vector.shape_cast %35 : vector<1x256xi1> to vector<1x256xi1>
    %75 = vector.broadcast %74 : vector<1x256xi1> to vector<4x256xi1>
    %76 = arith.select %75, %72, %73 : vector<4x256xi1>, vector<4x256xf32>
    %77 = vector.extract_strided_slice %9 {offsets = [5, 0, 0], sizes = [1, 8, 4], strides = [1, 1, 1]} : vector<9x8x4xf32> to vector<1x8x4xf32>
    %78 = vector.shape_cast %77 : vector<1x8x4xf32> to vector<8x4xf32>
    %cst_41 = arith.constant dense<0.000000e+00> : vector<8x256xf32>
    %79 = tpu.matmul %78, %76, %cst_41 {dimension_numbers = #tpu.dot_dimension_numbers<[1], [0], [0], [1], [0, 0, 1, 1], [], []>} : vector<8x4xf32>, vector<4x256xf32>, vector<8x256xf32> -> vector<8x256xf32>
    %80 = arith.addf %71, %79 : vector<8x256xf32>
    %c0_42 = arith.constant 0 : index
    %c32 = arith.constant 32 : index
    %81 = vector.load %arg8[%c0_42, %c32] : memref<4x290xf32, #tpu.memory_space<vmem>>, vector<4x256xf32>
    %cst_43 = arith.constant 0.000000e+00 : f32
    %82 = vector.broadcast %cst_43 : f32 to vector<4x256xf32>
    %83 = vector.shape_cast %33 : vector<1x256xi1> to vector<1x256xi1>
    %84 = vector.broadcast %83 : vector<1x256xi1> to vector<4x256xi1>
    %85 = arith.select %84, %81, %82 : vector<4x256xi1>, vector<4x256xf32>
    %86 = vector.extract_strided_slice %9 {offsets = [6, 0, 0], sizes = [1, 8, 4], strides = [1, 1, 1]} : vector<9x8x4xf32> to vector<1x8x4xf32>
    %87 = vector.shape_cast %86 : vector<1x8x4xf32> to vector<8x4xf32>
    %cst_44 = arith.constant dense<0.000000e+00> : vector<8x256xf32>
    %88 = tpu.matmul %87, %85, %cst_44 {dimension_numbers = #tpu.dot_dimension_numbers<[1], [0], [0], [1], [0, 0, 1, 1], [], []>} : vector<8x4xf32>, vector<4x256xf32>, vector<8x256xf32> -> vector<8x256xf32>
    %89 = arith.addf %80, %88 : vector<8x256xf32>
    %c0_45 = arith.constant 0 : index
    %c33 = arith.constant 33 : index
    %90 = vector.load %arg8[%c0_45, %c33] : memref<4x290xf32, #tpu.memory_space<vmem>>, vector<4x256xf32>
    %91 = vector.extract_strided_slice %9 {offsets = [7, 0, 0], sizes = [1, 8, 4], strides = [1, 1, 1]} : vector<9x8x4xf32> to vector<1x8x4xf32>
    %92 = vector.shape_cast %91 : vector<1x8x4xf32> to vector<8x4xf32>
    %cst_46 = arith.constant dense<0.000000e+00> : vector<8x256xf32>
    %93 = tpu.matmul %92, %90, %cst_46 {dimension_numbers = #tpu.dot_dimension_numbers<[1], [0], [0], [1], [0, 0, 1, 1], [], []>} : vector<8x4xf32>, vector<4x256xf32>, vector<8x256xf32> -> vector<8x256xf32>
    %94 = arith.addf %89, %93 : vector<8x256xf32>
    %c0_47 = arith.constant 0 : index
    %c34 = arith.constant 34 : index
    %95 = vector.load %arg8[%c0_47, %c34] : memref<4x290xf32, #tpu.memory_space<vmem>>, vector<4x256xf32>
    %cst_48 = arith.constant 0.000000e+00 : f32
    %96 = vector.broadcast %cst_48 : f32 to vector<4x256xf32>
    %97 = vector.shape_cast %35 : vector<1x256xi1> to vector<1x256xi1>
    %98 = vector.broadcast %97 : vector<1x256xi1> to vector<4x256xi1>
    %99 = arith.select %98, %95, %96 : vector<4x256xi1>, vector<4x256xf32>
    %100 = vector.extract_strided_slice %9 {offsets = [8, 0, 0], sizes = [1, 8, 4], strides = [1, 1, 1]} : vector<9x8x4xf32> to vector<1x8x4xf32>
    %101 = vector.shape_cast %100 : vector<1x8x4xf32> to vector<8x4xf32>
    %cst_49 = arith.constant dense<0.000000e+00> : vector<8x256xf32>
    %102 = tpu.matmul %101, %99, %cst_49 {dimension_numbers = #tpu.dot_dimension_numbers<[1], [0], [0], [1], [0, 0, 1, 1], [], []>} : vector<8x4xf32>, vector<4x256xf32>, vector<8x256xf32> -> vector<8x256xf32>
    %103 = arith.addf %94, %102 : vector<8x256xf32>
    %104 = vector.broadcast %10 : vector<8x1xf32> to vector<8x256xf32>
    %105 = arith.addf %103, %104 : vector<8x256xf32>
    %cst_50 = arith.constant 0.000000e+00 : f32
    %106 = vector.broadcast %cst_50 : f32 to vector<8x256xf32>
    %107 = arith.maximumf %105, %106 : vector<8x256xf32>
    %cst_51 = arith.constant dense<0.000000e+00> : vector<4x256xf32>
    %108 = tpu.matmul %11, %107, %cst_51 {dimension_numbers = #tpu.dot_dimension_numbers<[1], [0], [0], [1], [0, 0, 1, 1], [], []>} : vector<4x8xf32>, vector<8x256xf32>, vector<4x256xf32> -> vector<4x256xf32>
    %109 = vector.broadcast %12 : vector<4x1xf32> to vector<4x256xf32>
    %110 = arith.addf %108, %109 : vector<4x256xf32>
    %c0_52 = arith.constant 0 : index
    %c0_53 = arith.constant 0 : index
    %c0_54 = arith.constant 0 : index
    %111 = vector.load %arg7[%c0_52, %c0_53, %c0_54] : memref<1x4x256xf32, #tpu.memory_space<vmem>>, vector<1x4x256xf32>
    %112 = vector.shape_cast %111 : vector<1x4x256xf32> to vector<4x256xf32>
    %113 = vector.shape_cast %110 : vector<4x256xf32> to vector<1x4x256xf32>
    tpu.vector_store %arg7[%c0_52, %c0_53, %c0_54], %113 {strides = array<i32>} : memref<1x4x256xf32, #tpu.memory_space<vmem>>, vector<1x4x256xf32>,
    return
  }
  func.func @transform_0(%arg0: i32, %arg1: i32) -> (i32, i32, i32) {
    %c0_i32 = arith.constant 0 : i32
    %c0_i32_0 = arith.constant 0 : i32
    return %arg0, %c0_i32, %arg1 : i32, i32, i32
  }
  func.func @transform_1(%arg0: i32, %arg1: i32) -> (i32, i32, i32) {
    %c0_i32 = arith.constant 0 : i32
    %c0_i32_0 = arith.constant 0 : i32
    %c0_i32_1 = arith.constant 0 : i32
    %c0_i32_2 = arith.constant 0 : i32
    return %c0_i32, %c0_i32_0, %c0_i32_1 : i32, i32, i32
  }
  func.func @transform_2(%arg0: i32, %arg1: i32) -> (i32, i32) {
    %c0_i32 = arith.constant 0 : i32
    %c0_i32_0 = arith.constant 0 : i32
    %c0_i32_1 = arith.constant 0 : i32
    return %c0_i32, %c0_i32_0 : i32, i32
  }
  func.func @transform_3(%arg0: i32, %arg1: i32) -> (i32, i32) {
    %c0_i32 = arith.constant 0 : i32
    %c0_i32_0 = arith.constant 0 : i32
    %c0_i32_1 = arith.constant 0 : i32
    return %c0_i32, %c0_i32_0 : i32, i32
  }
  func.func @transform_4(%arg0: i32, %arg1: i32) -> (i32, i32) {
    %c0_i32 = arith.constant 0 : i32
    %c0_i32_0 = arith.constant 0 : i32
    %c0_i32_1 = arith.constant 0 : i32
    return %c0_i32, %c0_i32_0 : i32, i32
  }
  func.func @transform_5(%arg0: i32, %arg1: i32) -> (i32, i32, i32) {
    %c0_i32 = arith.constant 0 : i32
    %c0_i32_0 = arith.constant 0 : i32
    return %arg0, %c0_i32, %arg1 : i32, i32, i32
  }
}

</mosaic_0001>

<llo_original>
// kernel: tpu_custom_call.1
$region0: #{tpu_custom_call.1}
  #allocation0 [shape = 'u32[]', space=smem, size = 0x4, offset = 0x4, fixed_abs, tag = 'smem constant byte address 0x4 - core index']
  #allocation1 [shape = 'u32[144,128]{1,0:T(1,128)}', space=vmem, size = 0x12000, scoped, tag = 'internal scratch']
  #allocation2 [shape = 'f32[4,290]{1,0:T(4,128)}', space=vmem, size = 0x1800, scoped, tag = 'scratch operand']
  %s0 = inlined_call_operand.vmem [shape: f32[2,4,256], index: 0, kind: input, shape index: {}]
  %s1 = inlined_call_operand.vmem [shape: f32[9,8,4], index: 1, kind: input, shape index: {}]
  %s2 = inlined_call_operand.vmem [shape: f32[8,1], index: 2, kind: input, shape index: {}]
  %s3 = inlined_call_operand.vmem [shape: f32[4,8], index: 3, kind: input, shape index: {}]
  %s4 = inlined_call_operand.vmem [shape: f32[4,1], index: 4, kind: input, shape index: {}]
  %s5 = inlined_call_operand.hbm [shape: f32[2,4,256], index: 5, kind: output, shape index: {}]
  %s6 = sld [smem:[#allocation0]]
  $region53: #{tpu_custom_call.1} parent=0
    _
  %s8 = ssub.s32 1, %s6
  %s9 = scalar_select 0, %s8, %s6
  $region1: #{tpu_custom_call.1} parent=0
    #allocation3 [shape = 'u8[8192]{0}', space=vmem, size = 0x2000, scoped, tag = 'output window, operand 0']
    #allocation4 [shape = 's32[2]{0}', space=sflag, size = 0x8, scoped, tag = 'scoped memory for tpu_custom_call.1']
    %10 = vsyncpa [#allocation4], 0
    %s11 = scalar_lea.sflag [#allocation4], 1
    %12 = vsyncpa %s11, 0
    loop: start=0, step=1, limit=4
    $region2: #{tpu_custom_call.1} parent=1 // loop_pre_header
      _
    $region3: #{tpu_custom_call.1} parent=1 // loop_header
      %s14 = sphi 0, %s18
      %p15 = scmp.ge.s32.totalorder %s14, 4
      %s21 = sphi 0, %s33
      %s22 = sphi 0, %s29
      %s23 = sphi 0, %s21
      %s24 = sphi 0, %s22
      %s25 = sphi 0, %s23
      %s26 = sphi 0, %s24
      %s38 = sphi 0, %s40
      %s41 = sphi 0, %s38
      %s42 = sphi 0, %s41
      %s58 = sphi 0, %s42
      %s62 = sphi 0, %s62
      %s64 = sphi 0, %s62
      %s65 = sphi 0, %s64
      %s79 = sphi 0, %s65
      %s83 = sphi 0, %s83
      %s85 = sphi 0, %s83
      %s86 = sphi 0, %s85
      %s100 = sphi 0, %s86
      %s104 = sphi 0, %s104
      %s106 = sphi 0, %s104
      %s107 = sphi 0, %s106
      %s121 = sphi 0, %s107
      %s125 = sphi 0, %s125
      %s127 = sphi 0, %s125
      %s128 = sphi 0, %s127
      %s142 = sphi 0, %s128
      %s150 = sphi 0, %s152
      %s153 = sphi 0, %s150
      %s154 = sphi 0, %s153
      %s170 = sphi 0, %s154
    $region4: #{tpu_custom_call.1} parent=1 // loop_header_branch
      %17 = sbr.rel (%p15) target = $region8
    $region5: #{tpu_custom_call.1} parent=1 // loop_body
      %s19 = ssub.s32 %s14, 1
      %s20 = ssub.s32 %s14, 2
      %s27 = sadd.s32 1, %s22
      %p28 = scmp.ge.s32.totalorder %s27, 1
      %s29 = scalar_select %p28, 0, %s27
      %s30 = sadd.s32 1, %s21
      %s31 = scalar_select %p28, %s30, %s21
      %p32 = scmp.ge.s32.totalorder %s31, 2
      %s33 = scalar_select %p32, 0, %s31
      %s34 = ssub.s32 %s21, %s33
      %s35 = ssub.s32 %s22, %s29
      %s36 = sor.u32 %s34, %s35
      %p37 = scmp.eq.s32.totalorder %s36, 0
      %s39 = sadd.s32 %s38, 1
      %s40 = scalar_select %p37, %s38, %s39
      %p43 = pneg %p37
      %p44 = scmp.eq.s32.totalorder %s14, 1
      %p45 = por %p43, %p44
      %p46 = scmp.ne.s32.totalorder %s38, %s41
      %p47 = scmp.eq.s32.totalorder %s14, 0
      %p48 = por %p46, %p47
      %p49 = scmp.ne.s32.totalorder %s38, %s41
      %p50 = scmp.eq.s32.totalorder %s19, 1
      %p51 = por %p49, %p50
      %p52 = scmp.ne.s32.totalorder %s41, %s42
      %p53 = scmp.eq.s32.totalorder %s19, 0
      %p54 = por %p52, %p53
      %p55 = scmp.ne.s32.totalorder %s41, %s42
      %p56 = scmp.eq.s32.totalorder %s20, 1
      %p57 = por %p55, %p56
      %p59 = scmp.ne.s32.totalorder %s42, %s58
      %p60 = scmp.eq.s32.totalorder %s20, 0
      %p61 = por %p59, %p60
      %s63 = sadd.s32 %s62, 1
      %p66 = scmp.eq.s32.totalorder %s14, 1
      %p67 = scmp.ne.s32.totalorder %s62, %s64
      %p68 = scmp.eq.s32.totalorder %s14, 0
      %p69 = por %p67, %p68
      %p70 = scmp.ne.s32.totalorder %s62, %s64
      %p71 = scmp.eq.s32.totalorder %s19, 1
      %p72 = por %p70, %p71
      %p73 = scmp.ne.s32.totalorder %s64, %s65
      %p74 = scmp.eq.s32.totalorder %s19, 0
      %p75 = por %p73, %p74
      %p76 = scmp.ne.s32.totalorder %s64, %s65
      %p77 = scmp.eq.s32.totalorder %s20, 1
      %p78 = por %p76, %p77
      %p80 = scmp.ne.s32.totalorder %s65, %s79
      %p81 = scmp.eq.s32.totalorder %s20, 0
      %p82 = por %p80, %p81
      %s84 = sadd.s32 %s83, 1
      %p87 = scmp.eq.s32.totalorder %s14, 1
      %p88 = scmp.ne.s32.totalorder %s83, %s85
      %p89 = scmp.eq.s32.totalorder %s14, 0
      %p90 = por %p88, %p89
      %p91 = scmp.ne.s32.totalorder %s83, %s85
      %p92 = scmp.eq.s32.totalorder %s19, 1
      %p93 = por %p91, %p92
      %p94 = scmp.ne.s32.totalorder %s85, %s86
      %p95 = scmp.eq.s32.totalorder %s19, 0
      %p96 = por %p94, %p95
      %p97 = scmp.ne.s32.totalorder %s85, %s86
      %p98 = scmp.eq.s32.totalorder %s20, 1
      %p99 = por %p97, %p98
      %p101 = scmp.ne.s32.totalorder %s86, %s100
      %p102 = scmp.eq.s32.totalorder %s20, 0
      %p103 = por %p101, %p102
      %s105 = sadd.s32 %s104, 1
      %p108 = scmp.eq.s32.totalorder %s14, 1
      %p109 = scmp.ne.s32.totalorder %s104, %s106
      %p110 = scmp.eq.s32.totalorder %s14, 0
      %p111 = por %p109, %p110
      %p112 = scmp.ne.s32.totalorder %s104, %s106
      %p113 = scmp.eq.s32.totalorder %s19, 1
      %p114 = por %p112, %p113
      %p115 = scmp.ne.s32.totalorder %s106, %s107
      %p116 = scmp.eq.s32.totalorder %s19, 0
      %p117 = por %p115, %p116
      %p118 = scmp.ne.s32.totalorder %s106, %s107
      %p119 = scmp.eq.s32.totalorder %s20, 1
      %p120 = por %p118, %p119
      %p122 = scmp.ne.s32.totalorder %s107, %s121
      %p123 = scmp.eq.s32.totalorder %s20, 0
      %p124 = por %p122, %p123
      %s126 = sadd.s32 %s125, 1
      %p129 = scmp.eq.s32.totalorder %s14, 1
      %p130 = scmp.ne.s32.totalorder %s125, %s127
      %p131 = scmp.eq.s32.totalorder %s14, 0
      %p132 = por %p130, %p131
      %p133 = scmp.ne.s32.totalorder %s125, %s127
      %p134 = scmp.eq.s32.totalorder %s19, 1
      %p135 = por %p133, %p134
      %p136 = scmp.ne.s32.totalorder %s127, %s128
      %p137 = scmp.eq.s32.totalorder %s19, 0
      %p138 = por %p136, %p137
      %p139 = scmp.ne.s32.totalorder %s127, %s128
      %p140 = scmp.eq.s32.totalorder %s20, 1
      %p141 = por %p139, %p140
      %p143 = scmp.ne.s32.totalorder %s128, %s142
      %p144 = scmp.eq.s32.totalorder %s20, 0
      %p145 = por %p143, %p144
      %s146 = ssub.s32 %s21, %s33
      %s147 = ssub.s32 %s22, %s29
      %s148 = sor.u32 %s146, %s147
      %p149 = scmp.eq.s32.totalorder %s148, 0
      %s151 = sadd.s32 %s150, 1
      %s152 = scalar_select %p149, %s150, %s151
      %p155 = pneg %p149
      %p156 = scmp.eq.s32.totalorder %s14, 1
      %p157 = por %p155, %p156
      %p158 = scmp.ne.s32.totalorder %s150, %s153
      %p159 = scmp.eq.s32.totalorder %s14, 0
      %p160 = por %p158, %p159
      %p161 = scmp.ne.s32.totalorder %s150, %s153
      %p162 = scmp.eq.s32.totalorder %s19, 1
      %p163 = por %p161, %p162
      %p164 = scmp.ne.s32.totalorder %s153, %s154
      %p165 = scmp.eq.s32.totalorder %s19, 0
      %p166 = por %p164, %p165
      %p167 = scmp.ne.s32.totalorder %s153, %s154
      %p168 = scmp.eq.s32.totalorder %s20, 1
      %p169 = por %p167, %p168
      %p171 = scmp.ne.s32.totalorder %s154, %s170
      %p172 = scmp.eq.s32.totalorder %s20, 0
      %p173 = por %p171, %p172
      %p174 = scmp.le.s32.totalorder 1, %s14
      %p175 = scmp.lt.s32.totalorder %s14, 3
      %p176 = pnand %p174, %p175
      %p177 = pneg %p176
      // Predicated region
      $region9: #{tpu_custom_call.1} parent=5 // pred_check
        _
      $region10: #{tpu_custom_call.1} parent=5 // pred_check_branch
        %179 = sbr.rel (%p176) target = $region12
      $region11: #{tpu_custom_call.1} parent=5 // pred_region
        %s180 = ssub.s32 %s14, 1
        // Predicated region
        $region13: #{tpu_custom_call.1} parent=11 // pred_check
          %p181 = pneg %p75
        $region14: #{tpu_custom_call.1} parent=11 // pred_check_branch
          %183 = sbr.rel (%p181) target = $region16
        $region15: #{tpu_custom_call.1} parent=11 // pred_region
          _
        $region16: #{tpu_custom_call.1} parent=11 // pred_fallthru
          _
        // Predicated region
        $region17: #{tpu_custom_call.1} parent=11 // pred_check
          %p184 = pneg %p96
        $region18: #{tpu_custom_call.1} parent=11 // pred_check_branch
          %186 = sbr.rel (%p184) target = $region20
        $region19: #{tpu_custom_call.1} parent=11 // pred_region
          _
        $region20: #{tpu_custom_call.1} parent=11 // pred_fallthru
          _
        // Predicated region
        $region21: #{tpu_custom_call.1} parent=11 // pred_check
          %p187 = pneg %p117
        $region22: #{tpu_custom_call.1} parent=11 // pred_check_branch
          %189 = sbr.rel (%p187) target = $region24
        $region23: #{tpu_custom_call.1} parent=11 // pred_region
          _
        $region24: #{tpu_custom_call.1} parent=11 // pred_fallthru
          _
        // Predicated region
        $region25: #{tpu_custom_call.1} parent=11 // pred_check
          %p190 = pneg %p138
        $region26: #{tpu_custom_call.1} parent=11 // pred_check_branch
          %192 = sbr.rel (%p190) target = $region28
        $region27: #{tpu_custom_call.1} parent=11 // pred_region
          _
        $region28: #{tpu_custom_call.1} parent=11 // pred_fallthru
          _
      $region12: #{tpu_custom_call.1} parent=5 // pred_fallthru
        _
      %p193 = scmp.lt.s32.totalorder %s14, 2
      // Predicated region
      $region29: #{tpu_custom_call.1} parent=5 // pred_check
        %p194 = pneg %p193
      $region30: #{tpu_custom_call.1} parent=5 // pred_check_branch
        %196 = sbr.rel (%p194) target = $region32
      $region31: #{tpu_custom_call.1} parent=5 // pred_region
        // Predicated region
        $region33: #{tpu_custom_call.1} parent=31 // pred_check
          %p197 = pneg %p48
        $region34: #{tpu_custom_call.1} parent=31 // pred_check_branch
          %199 = sbr.rel (%p197) target = $region36
        $region35: #{tpu_custom_call.1} parent=31 // pred_region
          %s200 = smul.u32 2, %s22
          %p201 = scmp.lt.s32.totalorder %s21, 1
          %s202 = scalar_select %p201, %s21, 1
          %p203 = scmp.lt.s32.totalorder %s200, 1
          %s204 = scalar_select %p203, %s200, 1
          %s205 = smul.addr %s202, 2
          %s206 = sadd.s32 %s204, %s205
          %s207 = smul.addr %s206, 4
          %s208 = scalar_lea.vmem %s0, %s207
          %s209 = smul.u32 2, %s22
        $region36: #{tpu_custom_call.1} parent=31 // pred_fallthru
          _
      $region32: #{tpu_custom_call.1} parent=5 // pred_fallthru
        _
      %p210 = scmp.le.s32.totalorder 1, %s14
      %p211 = scmp.lt.s32.totalorder %s14, 3
      %p212 = pnand %p210, %p211
      %p213 = pneg %p212
      // Predicated region
      $region37: #{tpu_custom_call.1} parent=5 // pred_check
        _
      $region38: #{tpu_custom_call.1} parent=5 // pred_check_branch
        %215 = sbr.rel (%p212) target = $region40
      $region39: #{tpu_custom_call.1} parent=5 // pred_region
        %s216 = ssub.s32 %s14, 1
        %s217 = smul.u32 2, %s24
        %p218 = scmp.lt.s32.totalorder %s23, 1
        %s219 = scalar_select %p218, %s23, 1
        %p220 = scmp.lt.s32.totalorder %s217, 1
        %s221 = scalar_select %p220, %s217, 1
        %s222 = smul.addr %s219, 2
        %s223 = sadd.s32 %s221, %s222
        %s224 = smul.addr %s223, 4
        %s225 = scalar_lea.vmem %s0, %s224
        %p226 = pneg %p54
        %p227 = pneg %p51
        %p228 = pneg %p75
        %p229 = pneg %p72
        %p230 = pneg %p96
        %p231 = pneg %p93
        %p232 = pneg %p117
        %p233 = pneg %p114
        %p234 = pneg %p138
        %p235 = pneg %p135
        %p236 = pneg %p166
        %p237 = pneg %p163
        %s238 = sand.u32 %s153, 1
        %s239 = scalar_lea.sflag [#allocation4], %s238
        %s240 = sand.u32 %s153, 1
        %s241 = smul.addr %s240, 8
        %s242 = scalar_lea.vmem [#allocation3], %s241
        %s243 = smul.u32 2, %s24
        %p244 = scmp.lt.s32.totalorder %s23, 1
        %s245 = scalar_select %p244, %s23, 1
        %p246 = scmp.lt.s32.totalorder %s243, 1
        %s247 = scalar_select %p246, %s243, 1
        %s248 = smul.addr %s245, 2
        %s249 = sadd.s32 %s247, %s248
        %s250 = smul.addr %s249, 4
        %s251 = scalar_lea.vmem %s0, %s250
        %s252 = smul.u32 2, %s24
        %s253 = smul.u32 2, %s24
        %vm254 = vcmask 3072
        %255 = vst.msk [vmem:[#allocation2] sm:$0xf] %vm254, 0.0
        %vm256 = vcmask 273672
        %257 = vst.msk [vmem:[#allocation2 + $0x8] sm:$0xf] %vm256, 0.0
        %vm258 = vcmask 134152
        %259 = vst.msk [vmem:[#allocation2] sm:$0xf] %vm258, 0.0
        %vm260 = vcmask 265352
        %261 = vst.msk [vmem:[#allocation2 + $0x8] sm:$0xf] %vm260, 0.0
        %v262 = vld [vmem:[%s251] sm:$0xff]
        %264 = vrot.lane.b32.xlu0 %v262, 17
        %v265 = vpop.permute.xlu0 %264
        %v266 = vrot.slane %v265, 4
        %vm267 = vcmask 138240
        %v268 = vsel %vm267, %v266, %v265
        %vm271 = vcmask 1043592
        %vm272 = vcmask 1047556
        %vm273 = vmor %vm272, %vm271
        %274 = vst.msk [vmem:[#allocation2] sm:$0xff] %vm273, %v268
        %vm275 = vcmask 134144
        %276 = vst.msk [vmem:[#allocation2 + $0x8] sm:$0xf] %vm275, %v266
        %v277 = vld [vmem:[%s1] sm:$0xff]
        %v278 = vld [vmem:[%s1 + $0x8] sm:$0xff]
        %v279 = vld [vmem:[%s1 + $0x10] sm:$0xff]
        %v280 = vld [vmem:[%s1 + $0x18] sm:$0xff]
        %v281 = vld [vmem:[%s1 + $0x20] sm:$0xff]
        %v282 = vld [vmem:[%s1 + $0x28] sm:$0xff]
        %v283 = vld [vmem:[%s1 + $0x30] sm:$0xff]
        %v284 = vld [vmem:[%s1 + $0x38] sm:$0xff]
        %v285 = vld [vmem:[%s1 + $0x40] sm:$0xff]
        %v286 = vld [vmem:[%s2] sm:$0xff]
        %v287 = vld [vmem:[%s3] sm:$0xf]
        %v288 = vld [vmem:[%s4] sm:$0xf]
        %v289 = vlaneseq
        %v290 = vand.u32 %v289, 127
        %v291 = vadd.s32 %v290, 128
        %vm292 = vcmp.lt.s32.totalorder %v290, 0
        %v293 = vsub.s32 0, %v290
        %v294 = vsel %vm292, %v293, %v290
        %v295 = vshrl.u32 %v294, 4
        %v296 = vand.u32 %v294, 15
        %v297 = vsub.s32 0, %v296
        %v298 = vsel %vm292, %v297, %v296
        %vm299 = vcmp.lt.s32.totalorder %v291, 0
        %v300 = vsub.s32 0, %v291
        %v301 = vsel %vm299, %v300, %v291
        %v302 = vshrl.u32 %v301, 4
        %v303 = vand.u32 %v301, 15
        %v304 = vsub.s32 0, %v303
        %v305 = vsel %vm299, %v304, %v303
        %vm306 = vcmp.ne.s32.totalorder %v298, 0
        %vm307 = vcmp.ne.s32.totalorder %v305, 0
        %vm308 = vcmp.lt.s32.totalorder %v298, 0
        %vm309 = vcmp.lt.s32.totalorder %v305, 0
        %vm310 = vmand %vm308, %vm306
        %vm311 = vmand %vm309, %vm307
        %v312 = vadd.s32 %v298, 16
        %v313 = vadd.s32 %v305, 16
        %v314 = vsel %vm310, %v312, %v298
        %v315 = vsel %vm311, %v313, %v305
        %vm316 = vcmp.ge.s32.totalorder %v314, 1
        %vm317 = vcmp.ge.s32.totalorder %v315, 1
        %vm318 = vcmp.le.s32.totalorder %v314, 14
        %vm319 = vcmp.le.s32.totalorder %v315, 14
        %v320 = vld [vmem:[#allocation2] sm:$0xff]
        %v321 = vsel %vm316, 1, 0
        %v322 = vsel %vm317, 1, 0
        %vm323 = vcmp.eq.s32.totalorder %v321, 1
        %vm324 = vcmp.eq.s32.totalorder %v322, 1
        %v326 = vcombine.high %v320, %v320
        %v328 = vsel %vm323, %v320, 0.0
        %v329 = vsel %vm324, %v326, 0.0
        %v330 = vld [vmem:[#allocation2 + $0x8] sm:$0xf]
        %332 = vrot.lane.b32.xlu0 %v320, 127
        %v333 = vpop.permute.xlu0 %332
        %334 = vrot.lane.b32.xlu0 %v326, 127
        %v335 = vpop.permute.xlu0 %334
        %336 = vrot.lane.b32.xlu0 %v330, 127
        %v337 = vpop.permute.xlu0 %336
        %vm338 = vcmask 1039360
        %v339 = vsel %vm338, %v333, %v335
        %v340 = vsel %vm338, %v335, %v337
        %vm341 = vcmask 31744
        %v343 = vsel %vm341, %v278, 0
        %vm345 = vcmask 1043456
        %v346 = vsel %vm345, %v339, 0
        %v348 = vsel %vm345, %v340, 0
        %350 = vmatprep.subr.mxu0 %v348
        %351 = vmatpush1.msra.mxu0 %v346
        %352 = vmatprep.subr.mxu0 0.0
        %353 = vmatpush1.msra.mxu0 0.0
        %354 = vmatprep.subr.mxu0 0.0
        %355 = vmatpush1.msra.mxu0 0.0
        %356 = vmatprep.subr.mxu0 0.0
        %357 = vmatpush1.msra.mxu0 0.0
        %358 = vmatprep.subr.mxu0 0.0
        %359 = vmatpush1.msra.mxu0 0.0
        %360 = vmatprep.subr.mxu0 0.0
        %361 = vmatpush1.msra.mxu0 0.0
        %362 = vmatprep.subr.mxu0 0.0
        %363 = vmatpush1.msra.mxu0 0.0
        %364 = vmatprep.subr.mxu0 0.0
        %365 = vmatpush1.msra.mxu0 0.0
        %366 = vmatprep.subr.mxu0 0.0
        %367 = vmatpush1.msra.mxu0 0.0
        %368 = vmatprep.subr.mxu0 0.0
        %369 = vmatpush1.msra.mxu0 0.0
        %370 = vmatprep.subr.mxu0 0.0
        %371 = vmatpush1.msra.mxu0 0.0
        %372 = vmatprep.subr.mxu0 0.0
        %373 = vmatpush1.msra.mxu0 0.0
        %374 = vmatprep.subr.mxu0 0.0
        %375 = vmatpush1.msra.mxu0 0.0
        %376 = vmatprep.subr.mxu0 0.0
        %377 = vmatpush1.msra.mxu0 0.0
        %378 = vmatprep.subr.mxu0 0.0
        %379 = vmatpush1.msra.mxu0 0.0
        %380 = vmatprep.subr.mxu0 0.0
        %381 = vmatpush1.msra.mxu0 0.0
        %382 = vmatprep.subr.mxu0 0.0
        %383 = vmatpush1.msra.mxu0 0.0
        %384 = vmatprep.subr.mxu0 0.0
        %385 = vmatpush1.msra.mxu0 0.0
        %386 = vmatprep.subr.mxu0 0.0
        %387 = vmatpush1.msra.mxu0 0.0
        %388 = vmatprep.subr.mxu0 0.0
        %389 = vmatpush1.msra.mxu0 0.0
        %390 = vmatprep.subr.mxu0 0.0
        %391 = vmatpush1.msra.mxu0 0.0
        %392 = vmatprep.subr.mxu0 0.0
        %393 = vmatpush1.msra.mxu0 0.0
        %394 = vmatprep.subr.mxu0 0.0
        %395 = vmatpush1.msra.mxu0 0.0
        %396 = vmatprep.subr.mxu0 0.0
        %397 = vmatpush1.msra.mxu0 0.0
        %398 = vmatprep.subr.mxu0 0.0
        %399 = vmatpush1.msra.mxu0 0.0
        %400 = vmatprep.subr.mxu0 0.0
        %401 = vmatpush1.msra.mxu0 0.0
        %402 = vmatprep.subr.mxu0 0.0
        %403 = vmatpush1.msra.mxu0 0.0
        %404 = vmatprep.subr.mxu0 0.0
        %405 = vmatpush1.msra.mxu0 0.0
        %406 = vmatprep.subr.mxu0 0.0
        %407 = vmatpush1.msra.mxu0 0.0
        %408 = vmatprep.subr.mxu0 0.0
        %409 = vmatpush1.msra.mxu0 0.0
        %410 = vmatprep.subr.mxu0 0.0
        %411 = vmatpush1.msra.mxu0 0.0
        %412 = vmatprep.subr.mxu0 0.0
        %413 = vmatpush1.msra.mxu0 0.0
        %414 = vmatprep.mubr.f32.mxu0 0.0
        %415 = vmatmul.mubr.f32.gmra.mrb[0].mxu0 %v343
        %v416 = vpop.f32.mrb[0].mxu0
        %v417 = vadd.f32 0.0, %v416
        %v418 = vpop.f32.mrb[0].mxu0
        %v419 = vadd.f32 0.0, %v418
        %420 = vdwg.mxu0
        %v422 = vsel %vm341, %v277, 0
        %v425 = vsel %vm345, %v328, 0
        %v428 = vsel %vm345, %v329, 0
        %430 = vmatprep.subr.mxu0 %v428
        %431 = vmatpush1.msra.mxu0 %v425
        %432 = vmatprep.subr.mxu0 0.0
        %433 = vmatpush1.msra.mxu0 0.0
        %434 = vmatprep.subr.mxu0 0.0
        %435 = vmatpush1.msra.mxu0 0.0
        %436 = vmatprep.subr.mxu0 0.0
        %437 = vmatpush1.msra.mxu0 0.0
        %438 = vmatprep.subr.mxu0 0.0
        %439 = vmatpush1.msra.mxu0 0.0
        %440 = vmatprep.subr.mxu0 0.0
        %441 = vmatpush1.msra.mxu0 0.0
        %442 = vmatprep.subr.mxu0 0.0
        %443 = vmatpush1.msra.mxu0 0.0
        %444 = vmatprep.subr.mxu0 0.0
        %445 = vmatpush1.msra.mxu0 0.0
        %446 = vmatprep.subr.mxu0 0.0
        %447 = vmatpush1.msra.mxu0 0.0
        %448 = vmatprep.subr.mxu0 0.0
        %449 = vmatpush1.msra.mxu0 0.0
        %450 = vmatprep.subr.mxu0 0.0
        %451 = vmatpush1.msra.mxu0 0.0
        %452 = vmatprep.subr.mxu0 0.0
        %453 = vmatpush1.msra.mxu0 0.0
        %454 = vmatprep.subr.mxu0 0.0
        %455 = vmatpush1.msra.mxu0 0.0
        %456 = vmatprep.subr.mxu0 0.0
        %457 = vmatpush1.msra.mxu0 0.0
        %458 = vmatprep.subr.mxu0 0.0
        %459 = vmatpush1.msra.mxu0 0.0
        %460 = vmatprep.subr.mxu0 0.0
        %461 = vmatpush1.msra.mxu0 0.0
        %462 = vmatprep.subr.mxu0 0.0
        %463 = vmatpush1.msra.mxu0 0.0
        %464 = vmatprep.subr.mxu0 0.0
        %465 = vmatpush1.msra.mxu0 0.0
        %466 = vmatprep.subr.mxu0 0.0
        %467 = vmatpush1.msra.mxu0 0.0
        %468 = vmatprep.subr.mxu0 0.0
        %469 = vmatpush1.msra.mxu0 0.0
        %470 = vmatprep.subr.mxu0 0.0
        %471 = vmatpush1.msra.mxu0 0.0
        %472 = vmatprep.subr.mxu0 0.0
        %473 = vmatpush1.msra.mxu0 0.0
        %474 = vmatprep.subr.mxu0 0.0
        %475 = vmatpush1.msra.mxu0 0.0
        %476 = vmatprep.subr.mxu0 0.0
        %477 = vmatpush1.msra.mxu0 0.0
        %478 = vmatprep.subr.mxu0 0.0
        %479 = vmatpush1.msra.mxu0 0.0
        %480 = vmatprep.subr.mxu0 0.0
        %481 = vmatpush1.msra.mxu0 0.0
        %482 = vmatprep.subr.mxu0 0.0
        %483 = vmatpush1.msra.mxu0 0.0
        %484 = vmatprep.subr.mxu0 0.0
        %485 = vmatpush1.msra.mxu0 0.0
        %486 = vmatprep.subr.mxu0 0.0
        %487 = vmatpush1.msra.mxu0 0.0
        %488 = vmatprep.subr.mxu0 0.0
        %489 = vmatpush1.msra.mxu0 0.0
        %490 = vmatprep.subr.mxu0 0.0
        %491 = vmatpush1.msra.mxu0 0.0
        %492 = vmatprep.subr.mxu0 0.0
        %493 = vmatpush1.msra.mxu0 0.0
        %494 = vmatprep.mubr.f32.mxu0 0.0
        %495 = vmatmul.mubr.f32.gmra.mrb[0].mxu0 %v422
        %v496 = vpop.f32.mrb[0].mxu0
        %v497 = vadd.f32 %v417, %v496
        %v498 = vpop.f32.mrb[0].mxu0
        %v499 = vadd.f32 %v419, %v498
        %500 = vdwg.mxu0
        %v501 = vld [vmem:[#allocation2] sm:$0xff]
        %v502 = vld [vmem:[#allocation2 + $0x8] sm:$0xf]
        %v503 = vsel %vm318, 1, 0
        %v504 = vsel %vm319, 1, 0
        %vm505 = vcmp.eq.s32.totalorder %v503, 1
        %vm506 = vcmp.eq.s32.totalorder %v504, 1
        %v509 = vcombine.high %v501, %v501
        %510 = vrot.lane.b32.xlu0 %v501, 126
        %v511 = vpop.permute.xlu0 %510
        %512 = vrot.lane.b32.xlu0 %v509, 126
        %v513 = vpop.permute.xlu0 %512
        %514 = vrot.lane.b32.xlu0 %v502, 126
        %v515 = vpop.permute.xlu0 %514
        %vm516 = vcmask 1031168
        %v517 = vsel %vm516, %v511, %v513
        %v518 = vsel %vm516, %v513, %v515
        %v521 = vsel %vm505, %v517, 0.0
        %v522 = vsel %vm506, %v518, 0.0
        %v524 = vsel %vm341, %v279, 0
        %v527 = vsel %vm345, %v521, 0
        %v530 = vsel %vm345, %v522, 0
        %532 = vmatprep.subr.mxu0 %v530
        %533 = vmatpush1.msra.mxu0 %v527
        %534 = vmatprep.subr.mxu0 0.0
        %535 = vmatpush1.msra.mxu0 0.0
        %536 = vmatprep.subr.mxu0 0.0
        %537 = vmatpush1.msra.mxu0 0.0
        %538 = vmatprep.subr.mxu0 0.0
        %539 = vmatpush1.msra.mxu0 0.0
        %540 = vmatprep.subr.mxu0 0.0
        %541 = vmatpush1.msra.mxu0 0.0
        %542 = vmatprep.subr.mxu0 0.0
        %543 = vmatpush1.msra.mxu0 0.0
        %544 = vmatprep.subr.mxu0 0.0
        %545 = vmatpush1.msra.mxu0 0.0
        %546 = vmatprep.subr.mxu0 0.0
        %547 = vmatpush1.msra.mxu0 0.0
        %548 = vmatprep.subr.mxu0 0.0
        %549 = vmatpush1.msra.mxu0 0.0
        %550 = vmatprep.subr.mxu0 0.0
        %551 = vmatpush1.msra.mxu0 0.0
        %552 = vmatprep.subr.mxu0 0.0
        %553 = vmatpush1.msra.mxu0 0.0
        %554 = vmatprep.subr.mxu0 0.0
        %555 = vmatpush1.msra.mxu0 0.0
        %556 = vmatprep.subr.mxu0 0.0
        %557 = vmatpush1.msra.mxu0 0.0
        %558 = vmatprep.subr.mxu0 0.0
        %559 = vmatpush1.msra.mxu0 0.0
        %560 = vmatprep.subr.mxu0 0.0
        %561 = vmatpush1.msra.mxu0 0.0
        %562 = vmatprep.subr.mxu0 0.0
        %563 = vmatpush1.msra.mxu0 0.0
        %564 = vmatprep.subr.mxu0 0.0
        %565 = vmatpush1.msra.mxu0 0.0
        %566 = vmatprep.subr.mxu0 0.0
        %567 = vmatpush1.msra.mxu0 0.0
        %568 = vmatprep.subr.mxu0 0.0
        %569 = vmatpush1.msra.mxu0 0.0
        %570 = vmatprep.subr.mxu0 0.0
        %571 = vmatpush1.msra.mxu0 0.0
        %572 = vmatprep.subr.mxu0 0.0
        %573 = vmatpush1.msra.mxu0 0.0
        %574 = vmatprep.subr.mxu0 0.0
        %575 = vmatpush1.msra.mxu0 0.0
        %576 = vmatprep.subr.mxu0 0.0
        %577 = vmatpush1.msra.mxu0 0.0
        %578 = vmatprep.subr.mxu0 0.0
        %579 = vmatpush1.msra.mxu0 0.0
        %580 = vmatprep.subr.mxu0 0.0
        %581 = vmatpush1.msra.mxu0 0.0
        %582 = vmatprep.subr.mxu0 0.0
        %583 = vmatpush1.msra.mxu0 0.0
        %584 = vmatprep.subr.mxu0 0.0
        %585 = vmatpush1.msra.mxu0 0.0
        %586 = vmatprep.subr.mxu0 0.0
        %587 = vmatpush1.msra.mxu0 0.0
        %588 = vmatprep.subr.mxu0 0.0
        %589 = vmatpush1.msra.mxu0 0.0
        %590 = vmatprep.subr.mxu0 0.0
        %591 = vmatpush1.msra.mxu0 0.0
        %592 = vmatprep.subr.mxu0 0.0
        %593 = vmatpush1.msra.mxu0 0.0
        %594 = vmatprep.subr.mxu0 0.0
        %595 = vmatpush1.msra.mxu0 0.0
        %596 = vmatprep.mubr.f32.mxu0 0.0
        %597 = vmatmul.mubr.f32.gmra.mrb[0].mxu0 %v524
        %v598 = vpop.f32.mrb[0].mxu0
        %v599 = vadd.f32 0.0, %v598
        %v600 = vpop.f32.mrb[0].mxu0
        %v601 = vadd.f32 0.0, %v600
        %602 = vdwg.mxu0
        %v603 = vadd.f32 %v497, %v599
        %v604 = vadd.f32 %v499, %v601
        %v605 = vld [vmem:[#allocation2] sm:$0xff]
        %v606 = vld [vmem:[#allocation2 + $0x8] sm:$0xf]
        %v609 = vcombine.high %v605, %v605
        %610 = vrot.lane.b32.xlu0 %v605, 112
        %v611 = vpop.permute.xlu0 %610
        %612 = vrot.lane.b32.xlu0 %v609, 112
        %v613 = vpop.permute.xlu0 %612
        %614 = vrot.lane.b32.xlu0 %v606, 112
        %v615 = vpop.permute.xlu0 %614
        %vm616 = vcmask 916480
        %v617 = vsel %vm616, %v611, %v613
        %v618 = vsel %vm616, %v613, %v615
        %v621 = vsel %vm323, %v617, 0.0
        %v622 = vsel %vm324, %v618, 0.0
        %v624 = vsel %vm341, %v280, 0
        %v627 = vsel %vm345, %v621, 0
        %v630 = vsel %vm345, %v622, 0
        %632 = vmatprep.subr.mxu0 %v630
        %633 = vmatpush1.msra.mxu0 %v627
        %634 = vmatprep.subr.mxu0 0.0
        %635 = vmatpush1.msra.mxu0 0.0
        %636 = vmatprep.subr.mxu0 0.0
        %637 = vmatpush1.msra.mxu0 0.0
        %638 = vmatprep.subr.mxu0 0.0
        %639 = vmatpush1.msra.mxu0 0.0
        %640 = vmatprep.subr.mxu0 0.0
        %641 = vmatpush1.msra.mxu0 0.0
        %642 = vmatprep.subr.mxu0 0.0
        %643 = vmatpush1.msra.mxu0 0.0
        %644 = vmatprep.subr.mxu0 0.0
        %645 = vmatpush1.msra.mxu0 0.0
        %646 = vmatprep.subr.mxu0 0.0
        %647 = vmatpush1.msra.mxu0 0.0
        %648 = vmatprep.subr.mxu0 0.0
        %649 = vmatpush1.msra.mxu0 0.0
        %650 = vmatprep.subr.mxu0 0.0
        %651 = vmatpush1.msra.mxu0 0.0
        %652 = vmatprep.subr.mxu0 0.0
        %653 = vmatpush1.msra.mxu0 0.0
        %654 = vmatprep.subr.mxu0 0.0
        %655 = vmatpush1.msra.mxu0 0.0
        %656 = vmatprep.subr.mxu0 0.0
        %657 = vmatpush1.msra.mxu0 0.0
        %658 = vmatprep.subr.mxu0 0.0
        %659 = vmatpush1.msra.mxu0 0.0
        %660 = vmatprep.subr.mxu0 0.0
        %661 = vmatpush1.msra.mxu0 0.0
        %662 = vmatprep.subr.mxu0 0.0
        %663 = vmatpush1.msra.mxu0 0.0
        %664 = vmatprep.subr.mxu0 0.0
        %665 = vmatpush1.msra.mxu0 0.0
        %666 = vmatprep.subr.mxu0 0.0
        %667 = vmatpush1.msra.mxu0 0.0
        %668 = vmatprep.subr.mxu0 0.0
        %669 = vmatpush1.msra.mxu0 0.0
        %670 = vmatprep.subr.mxu0 0.0
        %671 = vmatpush1.msra.mxu0 0.0
        %672 = vmatprep.subr.mxu0 0.0
        %673 = vmatpush1.msra.mxu0 0.0
        %674 = vmatprep.subr.mxu0 0.0
        %675 = vmatpush1.msra.mxu0 0.0
        %676 = vmatprep.subr.mxu0 0.0
        %677 = vmatpush1.msra.mxu0 0.0
        %678 = vmatprep.subr.mxu0 0.0
        %679 = vmatpush1.msra.mxu0 0.0
        %680 = vmatprep.subr.mxu0 0.0
        %681 = vmatpush1.msra.mxu0 0.0
        %682 = vmatprep.subr.mxu0 0.0
        %683 = vmatpush1.msra.mxu0 0.0
        %684 = vmatprep.subr.mxu0 0.0
        %685 = vmatpush1.msra.mxu0 0.0
        %686 = vmatprep.subr.mxu0 0.0
        %687 = vmatpush1.msra.mxu0 0.0
        %688 = vmatprep.subr.mxu0 0.0
        %689 = vmatpush1.msra.mxu0 0.0
        %690 = vmatprep.subr.mxu0 0.0
        %691 = vmatpush1.msra.mxu0 0.0
        %692 = vmatprep.subr.mxu0 0.0
        %693 = vmatpush1.msra.mxu0 0.0
        %694 = vmatprep.subr.mxu0 0.0
        %695 = vmatpush1.msra.mxu0 0.0
        %696 = vmatprep.mubr.f32.mxu0 0.0
        %697 = vmatmul.mubr.f32.gmra.mrb[0].mxu0 %v624
        %v698 = vpop.f32.mrb[0].mxu0
        %v699 = vadd.f32 0.0, %v698
        %v700 = vpop.f32.mrb[0].mxu0
        %v701 = vadd.f32 0.0, %v700
        %702 = vdwg.mxu0
        %v703 = vadd.f32 %v603, %v699
        %v704 = vadd.f32 %v604, %v701
        %v705 = vld [vmem:[#allocation2] sm:$0xff]
        %v706 = vld [vmem:[#allocation2 + $0x8] sm:$0xf]
        %v709 = vcombine.high %v705, %v705
        %710 = vrot.lane.b32.xlu0 %v705, 111
        %v711 = vpop.permute.xlu0 %710
        %712 = vrot.lane.b32.xlu0 %v709, 111
        %v713 = vpop.permute.xlu0 %712
        %714 = vrot.lane.b32.xlu0 %v706, 111
        %v715 = vpop.permute.xlu0 %714
        %vm716 = vcmask 908288
        %v717 = vsel %vm716, %v711, %v713
        %v718 = vsel %vm716, %v713, %v715
        %v720 = vsel %vm341, %v281, 0
        %v722 = vsel %vm345, %v717, 0
        %v724 = vsel %vm345, %v718, 0
        %726 = vmatprep.subr.mxu0 %v724
        %727 = vmatpush1.msra.mxu0 %v722
        %728 = vmatprep.subr.mxu0 0.0
        %729 = vmatpush1.msra.mxu0 0.0
        %730 = vmatprep.subr.mxu0 0.0
        %731 = vmatpush1.msra.mxu0 0.0
        %732 = vmatprep.subr.mxu0 0.0
        %733 = vmatpush1.msra.mxu0 0.0
        %734 = vmatprep.subr.mxu0 0.0
        %735 = vmatpush1.msra.mxu0 0.0
        %736 = vmatprep.subr.mxu0 0.0
        %737 = vmatpush1.msra.mxu0 0.0
        %738 = vmatprep.subr.mxu0 0.0
        %739 = vmatpush1.msra.mxu0 0.0
        %740 = vmatprep.subr.mxu0 0.0
        %741 = vmatpush1.msra.mxu0 0.0
        %742 = vmatprep.subr.mxu0 0.0
        %743 = vmatpush1.msra.mxu0 0.0
        %744 = vmatprep.subr.mxu0 0.0
        %745 = vmatpush1.msra.mxu0 0.0
        %746 = vmatprep.subr.mxu0 0.0
        %747 = vmatpush1.msra.mxu0 0.0
        %748 = vmatprep.subr.mxu0 0.0
        %749 = vmatpush1.msra.mxu0 0.0
        %750 = vmatprep.subr.mxu0 0.0
        %751 = vmatpush1.msra.mxu0 0.0
        %752 = vmatprep.subr.mxu0 0.0
        %753 = vmatpush1.msra.mxu0 0.0
        %754 = vmatprep.subr.mxu0 0.0
        %755 = vmatpush1.msra.mxu0 0.0
        %756 = vmatprep.subr.mxu0 0.0
        %757 = vmatpush1.msra.mxu0 0.0
        %758 = vmatprep.subr.mxu0 0.0
        %759 = vmatpush1.msra.mxu0 0.0
        %760 = vmatprep.subr.mxu0 0.0
        %761 = vmatpush1.msra.mxu0 0.0
        %762 = vmatprep.subr.mxu0 0.0
        %763 = vmatpush1.msra.mxu0 0.0
        %764 = vmatprep.subr.mxu0 0.0
        %765 = vmatpush1.msra.mxu0 0.0
        %766 = vmatprep.subr.mxu0 0.0
        %767 = vmatpush1.msra.mxu0 0.0
        %768 = vmatprep.subr.mxu0 0.0
        %769 = vmatpush1.msra.mxu0 0.0
        %770 = vmatprep.subr.mxu0 0.0
        %771 = vmatpush1.msra.mxu0 0.0
        %772 = vmatprep.subr.mxu0 0.0
        %773 = vmatpush1.msra.mxu0 0.0
        %774 = vmatprep.subr.mxu0 0.0
        %775 = vmatpush1.msra.mxu0 0.0
        %776 = vmatprep.subr.mxu0 0.0
        %777 = vmatpush1.msra.mxu0 0.0
        %778 = vmatprep.subr.mxu0 0.0
        %779 = vmatpush1.msra.mxu0 0.0
        %780 = vmatprep.subr.mxu0 0.0
        %781 = vmatpush1.msra.mxu0 0.0
        %782 = vmatprep.subr.mxu0 0.0
        %783 = vmatpush1.msra.mxu0 0.0
        %784 = vmatprep.subr.mxu0 0.0
        %785 = vmatpush1.msra.mxu0 0.0
        %786 = vmatprep.subr.mxu0 0.0
        %787 = vmatpush1.msra.mxu0 0.0
        %788 = vmatprep.subr.mxu0 0.0
        %789 = vmatpush1.msra.mxu0 0.0
        %790 = vmatprep.mubr.f32.mxu0 0.0
        %791 = vmatmul.mubr.f32.gmra.mrb[0].mxu0 %v720
        %v792 = vpop.f32.mrb[0].mxu0
        %v793 = vadd.f32 0.0, %v792
        %v794 = vpop.f32.mrb[0].mxu0
        %v795 = vadd.f32 0.0, %v794
        %796 = vdwg.mxu0
        %v797 = vadd.f32 %v703, %v793
        %v798 = vadd.f32 %v704, %v795
        %v799 = vld [vmem:[#allocation2] sm:$0xff]
        %v800 = vld [vmem:[#allocation2 + $0x8] sm:$0xf]
        %v803 = vcombine.high %v799, %v799
        %804 = vrot.lane.b32.xlu0 %v799, 110
        %v805 = vpop.permute.xlu0 %804
        %806 = vrot.lane.b32.xlu0 %v803, 110
        %v807 = vpop.permute.xlu0 %806
        %808 = vrot.lane.b32.xlu0 %v800, 110
        %v809 = vpop.permute.xlu0 %808
        %vm810 = vcmask 900096
        %v811 = vsel %vm810, %v805, %v807
        %v812 = vsel %vm810, %v807, %v809
        %v815 = vsel %vm505, %v811, 0.0
        %v816 = vsel %vm506, %v812, 0.0
        %v818 = vsel %vm341, %v282, 0
        %v821 = vsel %vm345, %v815, 0
        %v824 = vsel %vm345, %v816, 0
        %826 = vmatprep.subr.mxu0 %v824
        %827 = vmatpush1.msra.mxu0 %v821
        %828 = vmatprep.subr.mxu0 0.0
        %829 = vmatpush1.msra.mxu0 0.0
        %830 = vmatprep.subr.mxu0 0.0
        %831 = vmatpush1.msra.mxu0 0.0
        %832 = vmatprep.subr.mxu0 0.0
        %833 = vmatpush1.msra.mxu0 0.0
        %834 = vmatprep.subr.mxu0 0.0
        %835 = vmatpush1.msra.mxu0 0.0
        %836 = vmatprep.subr.mxu0 0.0
        %837 = vmatpush1.msra.mxu0 0.0
        %838 = vmatprep.subr.mxu0 0.0
        %839 = vmatpush1.msra.mxu0 0.0
        %840 = vmatprep.subr.mxu0 0.0
        %841 = vmatpush1.msra.mxu0 0.0
        %842 = vmatprep.subr.mxu0 0.0
        %843 = vmatpush1.msra.mxu0 0.0
        %844 = vmatprep.subr.mxu0 0.0
        %845 = vmatpush1.msra.mxu0 0.0
        %846 = vmatprep.subr.mxu0 0.0
        %847 = vmatpush1.msra.mxu0 0.0
        %848 = vmatprep.subr.mxu0 0.0
        %849 = vmatpush1.msra.mxu0 0.0
        %850 = vmatprep.subr.mxu0 0.0
        %851 = vmatpush1.msra.mxu0 0.0
        %852 = vmatprep.subr.mxu0 0.0
        %853 = vmatpush1.msra.mxu0 0.0
        %854 = vmatprep.subr.mxu0 0.0
        %855 = vmatpush1.msra.mxu0 0.0
        %856 = vmatprep.subr.mxu0 0.0
        %857 = vmatpush1.msra.mxu0 0.0
        %858 = vmatprep.subr.mxu0 0.0
        %859 = vmatpush1.msra.mxu0 0.0
        %860 = vmatprep.subr.mxu0 0.0
        %861 = vmatpush1.msra.mxu0 0.0
        %862 = vmatprep.subr.mxu0 0.0
        %863 = vmatpush1.msra.mxu0 0.0
        %864 = vmatprep.subr.mxu0 0.0
        %865 = vmatpush1.msra.mxu0 0.0
        %866 = vmatprep.subr.mxu0 0.0
        %867 = vmatpush1.msra.mxu0 0.0
        %868 = vmatprep.subr.mxu0 0.0
        %869 = vmatpush1.msra.mxu0 0.0
        %870 = vmatprep.subr.mxu0 0.0
        %871 = vmatpush1.msra.mxu0 0.0
        %872 = vmatprep.subr.mxu0 0.0
        %873 = vmatpush1.msra.mxu0 0.0
        %874 = vmatprep.subr.mxu0 0.0
        %875 = vmatpush1.msra.mxu0 0.0
        %876 = vmatprep.subr.mxu0 0.0
        %877 = vmatpush1.msra.mxu0 0.0
        %878 = vmatprep.subr.mxu0 0.0
        %879 = vmatpush1.msra.mxu0 0.0
        %880 = vmatprep.subr.mxu0 0.0
        %881 = vmatpush1.msra.mxu0 0.0
        %882 = vmatprep.subr.mxu0 0.0
        %883 = vmatpush1.msra.mxu0 0.0
        %884 = vmatprep.subr.mxu0 0.0
        %885 = vmatpush1.msra.mxu0 0.0
        %886 = vmatprep.subr.mxu0 0.0
        %887 = vmatpush1.msra.mxu0 0.0
        %888 = vmatprep.subr.mxu0 0.0
        %889 = vmatpush1.msra.mxu0 0.0
        %890 = vmatprep.mubr.f32.mxu0 0.0
        %891 = vmatmul.mubr.f32.gmra.mrb[0].mxu0 %v818
        %v892 = vpop.f32.mrb[0].mxu0
        %v893 = vadd.f32 0.0, %v892
        %v894 = vpop.f32.mrb[0].mxu0
        %v895 = vadd.f32 0.0, %v894
        %896 = vdwg.mxu0
        %v897 = vadd.f32 %v797, %v893
        %v898 = vadd.f32 %v798, %v895
        %v899 = vld [vmem:[#allocation2] sm:$0xff]
        %v900 = vld [vmem:[#allocation2 + $0x8] sm:$0xf]
        %v903 = vcombine.high %v899, %v899
        %904 = vrot.lane.b32.xlu0 %v899, 96
        %v905 = vpop.permute.xlu0 %904
        %906 = vrot.lane.b32.xlu0 %v903, 96
        %v907 = vpop.permute.xlu0 %906
        %908 = vrot.lane.b32.xlu0 %v900, 96
        %v909 = vpop.permute.xlu0 %908
        %vm910 = vcmask 785408
        %v911 = vsel %vm910, %v905, %v907
        %v912 = vsel %vm910, %v907, %v909
        %v915 = vsel %vm323, %v911, 0.0
        %v916 = vsel %vm324, %v912, 0.0
        %v918 = vsel %vm341, %v283, 0
        %v921 = vsel %vm345, %v915, 0
        %v924 = vsel %vm345, %v916, 0
        %926 = vmatprep.subr.mxu0 %v924
        %927 = vmatpush1.msra.mxu0 %v921
        %928 = vmatprep.subr.mxu0 0.0
        %929 = vmatpush1.msra.mxu0 0.0
        %930 = vmatprep.subr.mxu0 0.0
        %931 = vmatpush1.msra.mxu0 0.0
        %932 = vmatprep.subr.mxu0 0.0
        %933 = vmatpush1.msra.mxu0 0.0
        %934 = vmatprep.subr.mxu0 0.0
        %935 = vmatpush1.msra.mxu0 0.0
        %936 = vmatprep.subr.mxu0 0.0
        %937 = vmatpush1.msra.mxu0 0.0
        %938 = vmatprep.subr.mxu0 0.0
        %939 = vmatpush1.msra.mxu0 0.0
        %940 = vmatprep.subr.mxu0 0.0
        %941 = vmatpush1.msra.mxu0 0.0
        %942 = vmatprep.subr.mxu0 0.0
        %943 = vmatpush1.msra.mxu0 0.0
        %944 = vmatprep.subr.mxu0 0.0
        %945 = vmatpush1.msra.mxu0 0.0
        %946 = vmatprep.subr.mxu0 0.0
        %947 = vmatpush1.msra.mxu0 0.0
        %948 = vmatprep.subr.mxu0 0.0
        %949 = vmatpush1.msra.mxu0 0.0
        %950 = vmatprep.subr.mxu0 0.0
        %951 = vmatpush1.msra.mxu0 0.0
        %952 = vmatprep.subr.mxu0 0.0
        %953 = vmatpush1.msra.mxu0 0.0
        %954 = vmatprep.subr.mxu0 0.0
        %955 = vmatpush1.msra.mxu0 0.0
        %956 = vmatprep.subr.mxu0 0.0
        %957 = vmatpush1.msra.mxu0 0.0
        %958 = vmatprep.subr.mxu0 0.0
        %959 = vmatpush1.msra.mxu0 0.0
        %960 = vmatprep.subr.mxu0 0.0
        %961 = vmatpush1.msra.mxu0 0.0
        %962 = vmatprep.subr.mxu0 0.0
        %963 = vmatpush1.msra.mxu0 0.0
        %964 = vmatprep.subr.mxu0 0.0
        %965 = vmatpush1.msra.mxu0 0.0
        %966 = vmatprep.subr.mxu0 0.0
        %967 = vmatpush1.msra.mxu0 0.0
        %968 = vmatprep.subr.mxu0 0.0
        %969 = vmatpush1.msra.mxu0 0.0
        %970 = vmatprep.subr.mxu0 0.0
        %971 = vmatpush1.msra.mxu0 0.0
        %972 = vmatprep.subr.mxu0 0.0
        %973 = vmatpush1.msra.mxu0 0.0
        %974 = vmatprep.subr.mxu0 0.0
        %975 = vmatpush1.msra.mxu0 0.0
        %976 = vmatprep.subr.mxu0 0.0
        %977 = vmatpush1.msra.mxu0 0.0
        %978 = vmatprep.subr.mxu0 0.0
        %979 = vmatpush1.msra.mxu0 0.0
        %980 = vmatprep.subr.mxu0 0.0
        %981 = vmatpush1.msra.mxu0 0.0
        %982 = vmatprep.subr.mxu0 0.0
        %983 = vmatpush1.msra.mxu0 0.0
        %984 = vmatprep.subr.mxu0 0.0
        %985 = vmatpush1.msra.mxu0 0.0
        %986 = vmatprep.subr.mxu0 0.0
        %987 = vmatpush1.msra.mxu0 0.0
        %988 = vmatprep.subr.mxu0 0.0
        %989 = vmatpush1.msra.mxu0 0.0
        %990 = vmatprep.mubr.f32.mxu0 0.0
        %991 = vmatmul.mubr.f32.gmra.mrb[0].mxu0 %v918
        %v992 = vpop.f32.mrb[0].mxu0
        %v993 = vadd.f32 0.0, %v992
        %v994 = vpop.f32.mrb[0].mxu0
        %v995 = vadd.f32 0.0, %v994
        %996 = vdwg.mxu0
        %v997 = vadd.f32 %v897, %v993
        %v998 = vadd.f32 %v898, %v995
        %v999 = vld [vmem:[#allocation2] sm:$0xff]
        %v1000 = vld [vmem:[#allocation2 + $0x8] sm:$0xf]
        %v1003 = vcombine.high %v999, %v999
        %1004 = vrot.lane.b32.xlu0 %v999, 95
        %v1005 = vpop.permute.xlu0 %1004
        %1006 = vrot.lane.b32.xlu0 %v1003, 95
        %v1007 = vpop.permute.xlu0 %1006
        %1008 = vrot.lane.b32.xlu0 %v1000, 95
        %v1009 = vpop.permute.xlu0 %1008
        %vm1010 = vcmask 777216
        %v1011 = vsel %vm1010, %v1005, %v1007
        %v1012 = vsel %vm1010, %v1007, %v1009
        %v1014 = vsel %vm341, %v284, 0
        %v1016 = vsel %vm345, %v1011, 0
        %v1018 = vsel %vm345, %v1012, 0
        %1020 = vmatprep.subr.mxu0 %v1018
        %1021 = vmatpush1.msra.mxu0 %v1016
        %1022 = vmatprep.subr.mxu0 0.0
        %1023 = vmatpush1.msra.mxu0 0.0
        %1024 = vmatprep.subr.mxu0 0.0
        %1025 = vmatpush1.msra.mxu0 0.0
        %1026 = vmatprep.subr.mxu0 0.0
        %1027 = vmatpush1.msra.mxu0 0.0
        %1028 = vmatprep.subr.mxu0 0.0
        %1029 = vmatpush1.msra.mxu0 0.0
        %1030 = vmatprep.subr.mxu0 0.0
        %1031 = vmatpush1.msra.mxu0 0.0
        %1032 = vmatprep.subr.mxu0 0.0
        %1033 = vmatpush1.msra.mxu0 0.0
        %1034 = vmatprep.subr.mxu0 0.0
        %1035 = vmatpush1.msra.mxu0 0.0
        %1036 = vmatprep.subr.mxu0 0.0
        %1037 = vmatpush1.msra.mxu0 0.0
        %1038 = vmatprep.subr.mxu0 0.0
        %1039 = vmatpush1.msra.mxu0 0.0
        %1040 = vmatprep.subr.mxu0 0.0
        %1041 = vmatpush1.msra.mxu0 0.0
        %1042 = vmatprep.subr.mxu0 0.0
        %1043 = vmatpush1.msra.mxu0 0.0
        %1044 = vmatprep.subr.mxu0 0.0
        %1045 = vmatpush1.msra.mxu0 0.0
        %1046 = vmatprep.subr.mxu0 0.0
        %1047 = vmatpush1.msra.mxu0 0.0
        %1048 = vmatprep.subr.mxu0 0.0
        %1049 = vmatpush1.msra.mxu0 0.0
        %1050 = vmatprep.subr.mxu0 0.0
        %1051 = vmatpush1.msra.mxu0 0.0
        %1052 = vmatprep.subr.mxu0 0.0
        %1053 = vmatpush1.msra.mxu0 0.0
        %1054 = vmatprep.subr.mxu0 0.0
        %1055 = vmatpush1.msra.mxu0 0.0
        %1056 = vmatprep.subr.mxu0 0.0
        %1057 = vmatpush1.msra.mxu0 0.0
        %1058 = vmatprep.subr.mxu0 0.0
        %1059 = vmatpush1.msra.mxu0 0.0
        %1060 = vmatprep.subr.mxu0 0.0
        %1061 = vmatpush1.msra.mxu0 0.0
        %1062 = vmatprep.subr.mxu0 0.0
        %1063 = vmatpush1.msra.mxu0 0.0
        %1064 = vmatprep.subr.mxu0 0.0
        %1065 = vmatpush1.msra.mxu0 0.0
        %1066 = vmatprep.subr.mxu0 0.0
        %1067 = vmatpush1.msra.mxu0 0.0
        %1068 = vmatprep.subr.mxu0 0.0
        %1069 = vmatpush1.msra.mxu0 0.0
        %1070 = vmatprep.subr.mxu0 0.0
        %1071 = vmatpush1.msra.mxu0 0.0
        %1072 = vmatprep.subr.mxu0 0.0
        %1073 = vmatpush1.msra.mxu0 0.0
        %1074 = vmatprep.subr.mxu0 0.0
        %1075 = vmatpush1.msra.mxu0 0.0
        %1076 = vmatprep.subr.mxu0 0.0
        %1077 = vmatpush1.msra.mxu0 0.0
        %1078 = vmatprep.subr.mxu0 0.0
        %1079 = vmatpush1.msra.mxu0 0.0
        %1080 = vmatprep.subr.mxu0 0.0
        %1081 = vmatpush1.msra.mxu0 0.0
        %1082 = vmatprep.subr.mxu0 0.0
        %1083 = vmatpush1.msra.mxu0 0.0
        %1084 = vmatprep.mubr.f32.mxu0 0.0
        %1085 = vmatmul.mubr.f32.gmra.mrb[0].mxu0 %v1014
        %v1086 = vpop.f32.mrb[0].mxu0
        %v1087 = vadd.f32 0.0, %v1086
        %v1088 = vpop.f32.mrb[0].mxu0
        %v1089 = vadd.f32 0.0, %v1088
        %1090 = vdwg.mxu0
        %v1091 = vadd.f32 %v997, %v1087
        %v1092 = vadd.f32 %v998, %v1089
        %v1093 = vld [vmem:[#allocation2] sm:$0xff]
        %v1094 = vld [vmem:[#allocation2 + $0x8] sm:$0xf]
        %v1097 = vcombine.high %v1093, %v1093
        %1098 = vrot.lane.b32.xlu0 %v1093, 94
        %v1099 = vpop.permute.xlu0 %1098
        %1100 = vrot.lane.b32.xlu0 %v1097, 94
        %v1101 = vpop.permute.xlu0 %1100
        %1102 = vrot.lane.b32.xlu0 %v1094, 94
        %v1103 = vpop.permute.xlu0 %1102
        %vm1104 = vcmask 769024
        %v1105 = vsel %vm1104, %v1099, %v1101
        %v1106 = vsel %vm1104, %v1101, %v1103
        %v1109 = vsel %vm505, %v1105, 0.0
        %v1110 = vsel %vm506, %v1106, 0.0
        %v1112 = vsel %vm341, %v285, 0
        %v1115 = vsel %vm345, %v1109, 0
        %v1118 = vsel %vm345, %v1110, 0
        %1120 = vmatprep.subr.mxu0 %v1118
        %1121 = vmatpush1.msra.mxu0 %v1115
        %1122 = vmatprep.subr.mxu0 0.0
        %1123 = vmatpush1.msra.mxu0 0.0
        %1124 = vmatprep.subr.mxu0 0.0
        %1125 = vmatpush1.msra.mxu0 0.0
        %1126 = vmatprep.subr.mxu0 0.0
        %1127 = vmatpush1.msra.mxu0 0.0
        %1128 = vmatprep.subr.mxu0 0.0
        %1129 = vmatpush1.msra.mxu0 0.0
        %1130 = vmatprep.subr.mxu0 0.0
        %1131 = vmatpush1.msra.mxu0 0.0
        %1132 = vmatprep.subr.mxu0 0.0
        %1133 = vmatpush1.msra.mxu0 0.0
        %1134 = vmatprep.subr.mxu0 0.0
        %1135 = vmatpush1.msra.mxu0 0.0
        %1136 = vmatprep.subr.mxu0 0.0
        %1137 = vmatpush1.msra.mxu0 0.0
        %1138 = vmatprep.subr.mxu0 0.0
        %1139 = vmatpush1.msra.mxu0 0.0
        %1140 = vmatprep.subr.mxu0 0.0
        %1141 = vmatpush1.msra.mxu0 0.0
        %1142 = vmatprep.subr.mxu0 0.0
        %1143 = vmatpush1.msra.mxu0 0.0
        %1144 = vmatprep.subr.mxu0 0.0
        %1145 = vmatpush1.msra.mxu0 0.0
        %1146 = vmatprep.subr.mxu0 0.0
        %1147 = vmatpush1.msra.mxu0 0.0
        %1148 = vmatprep.subr.mxu0 0.0
        %1149 = vmatpush1.msra.mxu0 0.0
        %1150 = vmatprep.subr.mxu0 0.0
        %1151 = vmatpush1.msra.mxu0 0.0
        %1152 = vmatprep.subr.mxu0 0.0
        %1153 = vmatpush1.msra.mxu0 0.0
        %1154 = vmatprep.subr.mxu0 0.0
        %1155 = vmatpush1.msra.mxu0 0.0
        %1156 = vmatprep.subr.mxu0 0.0
        %1157 = vmatpush1.msra.mxu0 0.0
        %1158 = vmatprep.subr.mxu0 0.0
        %1159 = vmatpush1.msra.mxu0 0.0
        %1160 = vmatprep.subr.mxu0 0.0
        %1161 = vmatpush1.msra.mxu0 0.0
        %1162 = vmatprep.subr.mxu0 0.0
        %1163 = vmatpush1.msra.mxu0 0.0
        %1164 = vmatprep.subr.mxu0 0.0
        %1165 = vmatpush1.msra.mxu0 0.0
        %1166 = vmatprep.subr.mxu0 0.0
        %1167 = vmatpush1.msra.mxu0 0.0
        %1168 = vmatprep.subr.mxu0 0.0
        %1169 = vmatpush1.msra.mxu0 0.0
        %1170 = vmatprep.subr.mxu0 0.0
        %1171 = vmatpush1.msra.mxu0 0.0
        %1172 = vmatprep.subr.mxu0 0.0
        %1173 = vmatpush1.msra.mxu0 0.0
        %1174 = vmatprep.subr.mxu0 0.0
        %1175 = vmatpush1.msra.mxu0 0.0
        %1176 = vmatprep.subr.mxu0 0.0
        %1177 = vmatpush1.msra.mxu0 0.0
        %1178 = vmatprep.subr.mxu0 0.0
        %1179 = vmatpush1.msra.mxu0 0.0
        %1180 = vmatprep.subr.mxu0 0.0
        %1181 = vmatpush1.msra.mxu0 0.0
        %1182 = vmatprep.subr.mxu0 0.0
        %1183 = vmatpush1.msra.mxu0 0.0
        %1184 = vmatprep.mubr.f32.mxu0 0.0
        %1185 = vmatmul.mubr.f32.gmra.mrb[0].mxu0 %v1112
        %v1186 = vpop.f32.mrb[0].mxu0
        %v1187 = vadd.f32 0.0, %v1186
        %v1188 = vpop.f32.mrb[0].mxu0
        %v1189 = vadd.f32 0.0, %v1188
        %1190 = vdwg.mxu0
        %v1191 = vadd.f32 %v1091, %v1187
        %v1192 = vadd.f32 %v1092, %v1189
        %1194 = vset.pattern.permute.xlu0 0
        %1195 = vperm.xlu0 %1194, %v286
        %v1196 = vpop.permute.xlu0 %1195
        %v1198 = vadd.f32 %v1191, %v1196
        %v1199 = vadd.f32 %v1192, %v1196
        %v1200 = vmax.f32 %v1198, 0.0
        %v1201 = vmax.f32 %v1199, 0.0
        %1203 = vset.pattern.permute.xlu0 0
        %1204 = vperm.xlu0 %1203, %v288
        %v1205 = vpop.permute.xlu0 %1204
        %vm1207 = vcmask 64512
        %v1209 = vsel %vm1207, %v287, 0
        %1211 = vmatprep.subr.mxu0 %v1201
        %1212 = vmatpush1.msra.mxu0 %v1200
        %1213 = vmatprep.subr.mxu0 0.0
        %1214 = vmatpush1.msra.mxu0 0.0
        %1215 = vmatprep.subr.mxu0 0.0
        %1216 = vmatpush1.msra.mxu0 0.0
        %1217 = vmatprep.subr.mxu0 0.0
        %1218 = vmatpush1.msra.mxu0 0.0
        %1219 = vmatprep.subr.mxu0 0.0
        %1220 = vmatpush1.msra.mxu0 0.0
        %1221 = vmatprep.subr.mxu0 0.0
        %1222 = vmatpush1.msra.mxu0 0.0
        %1223 = vmatprep.subr.mxu0 0.0
        %1224 = vmatpush1.msra.mxu0 0.0
        %1225 = vmatprep.subr.mxu0 0.0
        %1226 = vmatpush1.msra.mxu0 0.0
        %1227 = vmatprep.subr.mxu0 0.0
        %1228 = vmatpush1.msra.mxu0 0.0
        %1229 = vmatprep.subr.mxu0 0.0
        %1230 = vmatpush1.msra.mxu0 0.0
        %1231 = vmatprep.subr.mxu0 0.0
        %1232 = vmatpush1.msra.mxu0 0.0
        %1233 = vmatprep.subr.mxu0 0.0
        %1234 = vmatpush1.msra.mxu0 0.0
        %1235 = vmatprep.subr.mxu0 0.0
        %1236 = vmatpush1.msra.mxu0 0.0
        %1237 = vmatprep.subr.mxu0 0.0
        %1238 = vmatpush1.msra.mxu0 0.0
        %1239 = vmatprep.subr.mxu0 0.0
        %1240 = vmatpush1.msra.mxu0 0.0
        %1241 = vmatprep.subr.mxu0 0.0
        %1242 = vmatpush1.msra.mxu0 0.0
        %1243 = vmatprep.subr.mxu0 0.0
        %1244 = vmatpush1.msra.mxu0 0.0
        %1245 = vmatprep.subr.mxu0 0.0
        %1246 = vmatpush1.msra.mxu0 0.0
        %1247 = vmatprep.subr.mxu0 0.0
        %1248 = vmatpush1.msra.mxu0 0.0
        %1249 = vmatprep.subr.mxu0 0.0
        %1250 = vmatpush1.msra.mxu0 0.0
        %1251 = vmatprep.subr.mxu0 0.0
        %1252 = vmatpush1.msra.mxu0 0.0
        %1253 = vmatprep.subr.mxu0 0.0
        %1254 = vmatpush1.msra.mxu0 0.0
        %1255 = vmatprep.subr.mxu0 0.0
        %1256 = vmatpush1.msra.mxu0 0.0
        %1257 = vmatprep.subr.mxu0 0.0
        %1258 = vmatpush1.msra.mxu0 0.0
        %1259 = vmatprep.subr.mxu0 0.0
        %1260 = vmatpush1.msra.mxu0 0.0
        %1261 = vmatprep.subr.mxu0 0.0
        %1262 = vmatpush1.msra.mxu0 0.0
        %1263 = vmatprep.subr.mxu0 0.0
        %1264 = vmatpush1.msra.mxu0 0.0
        %1265 = vmatprep.subr.mxu0 0.0
        %1266 = vmatpush1.msra.mxu0 0.0
        %1267 = vmatprep.subr.mxu0 0.0
        %1268 = vmatpush1.msra.mxu0 0.0
        %1269 = vmatprep.subr.mxu0 0.0
        %1270 = vmatpush1.msra.mxu0 0.0
        %1271 = vmatprep.subr.mxu0 0.0
        %1272 = vmatpush1.msra.mxu0 0.0
        %1273 = vmatprep.subr.mxu0 0.0
        %1274 = vmatpush1.msra.mxu0 0.0
        %1275 = vmatprep.mubr.f32.mxu0 0.0
        %1276 = vmatmul.mubr.f32.gmra.mrb[0].mxu0 %v1209
        %v1277 = vpop.f32.mrb[0].mxu0
        %v1278 = vadd.f32 %v1205, %v1277
        %v1279 = vpop.f32.mrb[0].mxu0
        %v1280 = vadd.f32 %v1205, %v1279
        %1281 = vdwg.mxu0
        %v1284 = vcombine.low %v1278, %v1280
        %1286 = vst [vmem:[%s242] sm:$0xff] %v1284
        %s1287 = sand.u32 %s153, 1
        %s1288 = scalar_lea.sflag [#allocation4], %s1287
        %s1289 = sand.u32 %s153, 1
        %s1290 = smul.addr %s1289, 8
        %s1291 = scalar_lea.vmem [#allocation3], %s1290
        // Predicated region
        $region41: #{tpu_custom_call.1} parent=39 // pred_check
          %p1292 = pneg %p163
        $region42: #{tpu_custom_call.1} parent=39 // pred_check_branch
          %1294 = sbr.rel (%p1292) target = $region44
        $region43: #{tpu_custom_call.1} parent=39 // pred_region
          %s1295 = smul.u32 2, %s24
          %s1297 = ssub.s32 128, 128
          %1298 = vsyncadd %s1288, %s1297
          %s1299 = smul.addr %s23, 2
          %s1300 = sadd.s32 %s1295, %s1299
          %s1301 = smul.addr %s1300, 64
          %s1302 = scalar_lea.hbm %s5, %s1301
          %s1304 = sshll.u32 %s1291, 4
          %s1305 = int_to_ptr.vmem [resolvable:$true] %s1304
          %1307 = dma.vmem_to_hbm [thread:$0]  %s1305, 128, %s1302, %s1288
        $region44: #{tpu_custom_call.1} parent=39 // pred_fallthru
          _
      $region40: #{tpu_custom_call.1} parent=5 // pred_fallthru
        _
      %p1308 = scmp.le.s32.totalorder 2, %s14
      // Predicated region
      $region45: #{tpu_custom_call.1} parent=5 // pred_check
        %p1309 = pneg %p1308
      $region46: #{tpu_custom_call.1} parent=5 // pred_check_branch
        %1311 = sbr.rel (%p1309) target = $region48
      $region47: #{tpu_custom_call.1} parent=5 // pred_region
        %s1312 = ssub.s32 %s14, 2
        // Predicated region
        $region49: #{tpu_custom_call.1} parent=47 // pred_check
          %p1313 = pneg %p169
        $region50: #{tpu_custom_call.1} parent=47 // pred_check_branch
          %1315 = sbr.rel (%p1313) target = $region52
        $region51: #{tpu_custom_call.1} parent=47 // pred_region
          %s1316 = sand.u32 %s154, 1
          %s1317 = scalar_lea.sflag [#allocation4], %s1316
          %s1318 = sand.u32 %s154, 1
          %s1319 = smul.addr %s1318, 8
          %s1320 = scalar_lea.vmem [#allocation3], %s1319
          %1321 = dma.done %s1317, 128
        $region52: #{tpu_custom_call.1} parent=47 // pred_fallthru
          _
      $region48: #{tpu_custom_call.1} parent=5 // pred_fallthru
        _
    $region6: #{tpu_custom_call.1} parent=1 // loop_footer
      %s18 = sadd.s32 1, %s14
    $region7: #{tpu_custom_call.1} parent=1 // loop_footer_branch
      %13 = sbr.rel target = $region3
    $region8: #{tpu_custom_call.1} parent=1 // loop_exit
      _
    %1322 = vsyncpa [#allocation4], 1
    %s1323 = scalar_lea.sflag [#allocation4], 1
    %1324 = vsyncpa %s1323, 1

</llo_original>
